<compile_context>
chip_gen: v5e
topology: v5e:2x2
jax: 0.10.0
libtpu: 0.0.40
codegen_flags: <defaults>
</compile_context>

<pallas_src>
import functools
import math

import jax
import jax.numpy as jnp
import numpy as np
from jax import lax
from jax.experimental import pallas as pl
from jax.experimental.pallas import tpu as pltpu

EPS = 1e-5                       # torch.nn.LayerNorm default
LANE = 128                       # TPU lane width
VMEM_LIMIT = 48 * 1024 * 1024    # <= v7x 64 MiB physical VMEM; safe on v5e/v6e too


# ---------------------------------------------------------------------------
# Shared math helper (used inside the kernel and by the pure-JAX reference)
# ---------------------------------------------------------------------------
def _layernorm(x, w, b):
    mu = jnp.mean(x, axis=-1, keepdims=True)
    var = jnp.mean((x - mu) ** 2, axis=-1, keepdims=True)
    return (x - mu) * lax.rsqrt(var + EPS) * w + b


# ---------------------------------------------------------------------------
# Encoder kernel: embed-LN (l == 0) -> one transformer layer per grid step
# grid = (batch_tiles, num_layers); activation carried in a VMEM scratch.
# ---------------------------------------------------------------------------
def _encoder_kernel(x_ref, eln_w_ref, eln_b_ref,
                    w_in_ref, b_in_ref, w_out_ref, b_out_ref,
                    ln_w_ref, ln_b_ref, w1_ref, b1_ref, w2_ref, b2_ref,
                    h_ref, x_scr, *, num_heads):
    l = pl.program_id(1)
    TB, S, E = x_ref.shape
    M = TB * S
    H = num_heads
    hd = E // H
    scale = 1.0 / math.sqrt(hd)
    f32, bf16 = jnp.float32, jnp.bfloat16

    # Embed layernorm once per batch tile; activation lives in x_scr afterwards.
    @pl.when(l == 0)
    def _():
        x_scr[...] = _layernorm(x_ref[...].reshape(M, E),
                                eln_w_ref[...], eln_b_ref[...])

    x = x_scr[...]                                             # (M, E) f32

    # ---- multi-head self-attention (bf16 matmuls, f32 accumulation) --------
    qkv = jnp.dot(x.astype(bf16), w_in_ref[0],
                  preferred_element_type=f32) + b_in_ref[0]    # (M, 3E) f32
    q = (qkv[:, :E] * scale).astype(bf16).reshape(TB, S, E)    # 1/sqrt(hd) applied once
    k = qkv[:, E:2 * E].astype(bf16).reshape(TB, S, E)
    v = qkv[:, 2 * E:].astype(bf16).reshape(TB, S, E)

    # Heads stay in the lane axis (no axis-0 re-stacking / relayouts); each head
    # uses single-batch-dim einsums with bf16 operands and f32 accumulation.
    # TODO(synk): for real models (S, hd >= 128) fold several heads into the lane
    # axis of the softmax block to avoid <128-lane VPU/EUP waste at tiny S / hd.
    ctx = []
    for h in range(H):
        sl = slice(h * hd, (h + 1) * hd)
        s = jnp.einsum("bqd,bkd->bqk", q[:, :, sl], k[:, :, sl],
                       preferred_element_type=f32)             # (TB, S, S) f32
        s = s - jnp.max(s, axis=-1, keepdims=True)
        p = jnp.exp(s)
        p = p * pl.reciprocal(jnp.sum(p, axis=-1, keepdims=True), approx=True)
        ctx.append(jnp.einsum("bqk,bkd->bqd", p.astype(bf16), v[:, :, sl],
                              preferred_element_type=f32))     # (TB, S, hd) f32
    attn = jnp.concatenate(ctx, axis=-1).reshape(M, E)         # torch head-concat order
    attn = jnp.dot(attn.astype(bf16), w_out_ref[0],
                   preferred_element_type=f32) + b_out_ref[0]

    # residual + shared LayerNorm (the module reuses ONE LayerNorm twice)
    ln_w, ln_b = ln_w_ref[0], ln_b_ref[0]
    x1 = _layernorm(x + attn, ln_w, ln_b)

    # ---- feed-forward (hidden == E), ReLU -----------------------------------
    ff = jnp.dot(x1.astype(bf16), w1_ref[0], preferred_element_type=f32) + b1_ref[0]
    ff = jnp.maximum(ff, 0.0)
    ff = jnp.dot(ff.astype(bf16), w2_ref[0], preferred_element_type=f32) + b2_ref[0]

    x_new = _layernorm(x1 + ff, ln_w, ln_b)
    x_scr[...] = x_new                                         # carry to layer l+1

    @pl.when(l == pl.num_programs(1) - 1)
    def _():
        h_ref[...] = x_new.reshape(TB, S, E)


# ---------------------------------------------------------------------------
# Decoder kernel: lane-dense (rows, vocab)-tiled matmul
# ---------------------------------------------------------------------------
def _decoder_kernel(h_ref, w_ref, b_ref, o_ref):
    # TODO(synk): logits could be emitted as bf16 to halve the HBM writeback on
    # v5e if downstream tolerates it; kept f32 here for exact parity.
    o_ref[...] = jnp.dot(h_ref[...].astype(jnp.bfloat16), w_ref[...],
                         preferred_element_type=jnp.float32) + b_ref[...]


# ---------------------------------------------------------------------------
# Tile-size heuristics
# ---------------------------------------------------------------------------
def _pick_block_b(B, S, *, max_rows=1024, min_grid=2):
    """Batch tile: as many rows as reasonable, but leave >= min_grid tiles when
    B permits (v7x has 2 TensorCores; 'parallel' only helps with >= 2 tiles)."""
    bb = max(1, min(B, max_rows // max(S, 1)))
    if B >= min_grid:
        bb = min(bb, pl.cdiv(B, min_grid))
    return bb


def _pick_row_tile(M, *, max_rows=512, min_grid=2):
    cands = [d for d in range(1, M + 1)
             if M % d == 0 and d <= max_rows and (d % 8 == 0 or d == M)]
    if not cands:
        return M
    pref = [d for d in cands if M // d >= min_grid]
    return max(pref) if pref else max(cands)


def _pick_vocab_tile(Vp, *, max_tv=2048):
    tv = min(Vp, LANE)
    for cand in range(LANE, min(Vp, max_tv) + 1, LANE):
        if Vp % cand == 0:
            tv = cand
    return tv


# ---------------------------------------------------------------------------
# pallas_call wrappers
# ---------------------------------------------------------------------------
def fused_encoder(x, params, *, num_heads, block_b):
    Bp, S, E = x.shape
    L = params["W_in"].shape[0]
    grid = (Bp // block_b, L)

    def batch_tiled(shape):            # varies with batch tile, resident across layers
        return pl.BlockSpec(shape, lambda i, l: (i,) + (0,) * (len(shape) - 1))

    def per_layer(shape):              # streamed layer by layer (prefetched by pipeline)
        return pl.BlockSpec(shape, lambda i, l: (l,) + (0,) * (len(shape) - 1))

    def invariant(shape):              # tiny grid-invariant params
        return pl.BlockSpec(shape, lambda i, l: (0,) * len(shape))

    kernel = functools.partial(_encoder_kernel, num_heads=num_heads)
    return pl.pallas_call(
        kernel,
        grid=grid,
        in_specs=[
            batch_tiled((block_b, S, E)),                        # x (embedded + PE)
            invariant((1, E)), invariant((1, E)),                # embed layernorm
            per_layer((1, E, 3 * E)), per_layer((1, 1, 3 * E)),  # attn in_proj
            per_layer((1, E, E)), per_layer((1, 1, E)),          # attn out_proj
            per_layer((1, 1, E)), per_layer((1, 1, E)),          # shared layernorm
            per_layer((1, E, E)), per_layer((1, 1, E)),          # ffn layer_1
            per_layer((1, E, E)), per_layer((1, 1, E)),          # ffn layer_2
        ],
        out_specs=batch_tiled((block_b, S, E)),
        out_shape=jax.ShapeDtypeStruct((Bp, S, E), jnp.float32),
        scratch_shapes=[pltpu.VMEM((block_b * S, E), jnp.float32)],
        compiler_params=pltpu.CompilerParams(
            dimension_semantics=("parallel", "arbitrary"),
            vmem_limit_bytes=VMEM_LIMIT,
        ),
    )(x,
      params["eln_w"], params["eln_b"],
      params["W_in"], params["B_in"], params["W_out"], params["B_out"],
      params["LN_w"], params["LN_b"], params["W1"], params["B1"],
      params["W2"], params["B2"])


def decoder_matmul(h2d, dec_w, dec_b, *, tm, tv):
    M, E = h2d.shape
    Vp = dec_w.shape[1]
    grid = (M // tm, Vp // tv)
    return pl.pallas_call(
        _decoder_kernel,
        grid=grid,
        in_specs=[
            pl.BlockSpec((tm, E), lambda i, j: (i, 0)),
            pl.BlockSpec((E, tv), lambda i, j: (0, j)),
            pl.BlockSpec((1, tv), lambda i, j: (0, j)),
        ],
        out_specs=pl.BlockSpec((tm, tv), lambda i, j: (i, j)),
        out_shape=jax.ShapeDtypeStruct((M, Vp), jnp.float32),
        compiler_params=pltpu.CompilerParams(
            dimension_semantics=("parallel", "parallel"),
            vmem_limit_bytes=VMEM_LIMIT,
        ),
    )(h2d, dec_w, dec_b)


def mygpt_forward(seqs, params, *, num_heads, vocab_size):
    # TODO(synk): the nn.Embedding row gather stays in XLA; an in-kernel
    # scalar-prefetch gather (pl.Element) is possible but not worth it here.
    x = jnp.take(params["emb"], seqs, axis=0)                 # (B, S, E) f32
    x = x + params["pe"][: x.shape[0]]                         # pe[:B] quirk preserved
    B, S, E = x.shape

    block_b = _pick_block_b(B, S)
    Bp = pl.cdiv(B, block_b) * block_b
    if Bp != B:                                                # non-friendly B: pad batch
        x = jnp.pad(x, ((0, Bp - B), (0, 0), (0, 0)))

    hidden = fused_encoder(x, params, num_heads=num_heads, block_b=block_b)  # (Bp,S,E)

    Vp = params["dec_w_T"].shape[1]
    h2d = hidden.reshape(Bp * S, E)
    tm = _pick_row_tile(Bp * S)
    tv = _pick_vocab_tile(Vp)
    logits = decoder_matmul(h2d, params["dec_w_T"], params["dec_b"], tm=tm, tv=tv)
    return logits.reshape(Bp, S, Vp)[:B, :, :vocab_size]       # drop batch & lane padding


# ---------------------------------------------------------------------------
# Deterministic parameter construction (synthetic; mirrors nn.Module shapes)
# ---------------------------------------------------------------------------
def make_params(key, vocab_size, embed_dim, num_layers, max_len=16):
    E, V = embed_dim, vocab_size
    Vp = ((V + LANE - 1) // LANE) * LANE
    keys = iter(jax.random.split(key, 4 + 6 * num_layers))

    def u(k, shape, a):
        return jax.random.uniform(k, shape, jnp.float32, -a, a)

    params = {}
    params["emb"] = jax.random.normal(next(keys), (V, E), jnp.float32)   # nn.Embedding

    # sinusoidal positional encoding pe: (max_len, 1, E)
    position = np.arange(max_len)[:, None].astype(np.float32)
    div_term = np.exp(np.arange(0, E, 2).astype(np.float32) * (-math.log(10000.0) / E))
    pe = np.zeros((max_len, 1, E), np.float32)
    pe[:, 0, 0::2] = np.sin(position * div_term)
    pe[:, 0, 1::2] = np.cos(position * div_term)
    params["pe"] = jnp.asarray(pe)

    params["eln_w"] = jnp.ones((1, E), jnp.float32)
    params["eln_b"] = jnp.zeros((1, E), jnp.float32)

    a = 1.0 / math.sqrt(E)
    W_in, B_in, W_out, B_out = [], [], [], []
    LN_w, LN_b, W1, B1, W2, B2 = [], [], [], [], [], []
    for _ in range(num_layers):
        w_in = u(next(keys), (3 * E, E), a)     # in_proj_weight
        w_out = u(next(keys), (E, E), a)        # out_proj.weight
        w1 = u(next(keys), (E, E), a)           # ffn layer_1.weight
        w2 = u(next(keys), (E, E), a)           # ffn layer_2.weight
        b1 = u(next(keys), (1, E), a)
        b2 = u(next(keys), (1, E), a)
        W_in.append(w_in.T.astype(jnp.bfloat16))           # pre-transposed, bf16
        B_in.append(jnp.zeros((1, 3 * E), jnp.float32))    # torch inits in_proj bias to 0
        W_out.append(w_out.T.astype(jnp.bfloat16))
        B_out.append(jnp.zeros((1, E), jnp.float32))
        LN_w.append(jnp.ones((1, E), jnp.float32))
        LN_b.append(jnp.zeros((1, E), jnp.float32))
        W1.append(w1.T.astype(jnp.bfloat16)); B1.append(b1)
        W2.append(w2.T.astype(jnp.bfloat16)); B2.append(b2)

    params["W_in"] = jnp.stack(W_in);  params["B_in"] = jnp.stack(B_in)
    params["W_out"] = jnp.stack(W_out); params["B_out"] = jnp.stack(B_out)
    params["LN_w"] = jnp.stack(LN_w);  params["LN_b"] = jnp.stack(LN_b)
    params["W1"] = jnp.stack(W1);      params["B1"] = jnp.stack(B1)
    params["W2"] = jnp.stack(W2);      params["B2"] = jnp.stack(B2)

    # decoder: init_weights() -> uniform(-0.5, 0.5), bias zero; vocab padded to 128
    dec_w = u(next(keys), (V, E), 0.5)
    params["dec_w_T"] = jnp.pad(dec_w.T, ((0, 0), (0, Vp - V))).astype(jnp.bfloat16)
    params["dec_b"] = jnp.zeros((1, Vp), jnp.float32)
    return params


# ---------------------------------------------------------------------------
# Pure-JAX reference (same math & dtype policy, no Pallas) for correctness
# ---------------------------------------------------------------------------
def reference_forward(seqs, params, num_heads, vocab_size):
    bf = jnp.bfloat16
    x = params["emb"][seqs]
    x = x + params["pe"][: x.shape[0]]
    x = _layernorm(x, params["eln_w"], params["eln_b"])
    B, S, E = x.shape
    H = num_heads
    hd = E // H
    L = params["W_in"].shape[0]
    for l in range(L):
        w_in, b_in = params["W_in"][l], params["B_in"][l]
        w_out, b_out = params["W_out"][l], params["B_out"][l]
        ln_w, ln_b = params["LN_w"][l], params["LN_b"][l]
        w1, b1 = params["W1"][l], params["B1"][l]
        w2, b2 = params["W2"][l], params["B2"][l]
        qkv = jnp.dot(x.astype(bf), w_in, preferred_element_type=jnp.float32) + b_in
        q, k, v = qkv[..., :E], qkv[..., E:2 * E], qkv[..., 2 * E:]
        q = (q.reshape(B, S, H, hd).transpose(0, 2, 1, 3) / math.sqrt(hd)).astype(bf)
        k = k.reshape(B, S, H, hd).transpose(0, 2, 1, 3).astype(bf)
        v = v.reshape(B, S, H, hd).transpose(0, 2, 1, 3).astype(bf)
        s = jnp.einsum("bhqd,bhkd->bhqk", q, k, preferred_element_type=jnp.float32)
        p = jax.nn.softmax(s, axis=-1)
        o = jnp.einsum("bhqk,bhkd->bhqd", p.astype(bf), v,
                       preferred_element_type=jnp.float32)
        o = o.transpose(0, 2, 1, 3).reshape(B, S, E)
        attn = jnp.dot(o.astype(bf), w_out, preferred_element_type=jnp.float32) + b_out
        x1 = _layernorm(x + attn, ln_w, ln_b)
        h1 = jnp.maximum(jnp.dot(x1.astype(bf), w1,
                                 preferred_element_type=jnp.float32) + b1, 0.0)
        ffn = jnp.dot(h1.astype(bf), w2, preferred_element_type=jnp.float32) + b2
        x = _layernorm(x1 + ffn, ln_w, ln_b)
    logits = jnp.dot(x.astype(bf), params["dec_w_T"],
                     preferred_element_type=jnp.float32) + params["dec_b"]
    return logits[..., :vocab_size]


# ---------------------------------------------------------------------------
if __name__ == "__main__":
    # small, forward-consistent shapes
    VOCAB, EMBED, LAYERS, HEADS = 64, 32, 2, 4
    B, S = 2, 8
    assert EMBED % HEADS == 0

    seqs = jax.random.randint(jax.random.PRNGKey(0), (B, S), 0, VOCAB, dtype=jnp.int32)
    params = make_params(jax.random.PRNGKey(1), VOCAB, EMBED, LAYERS, max_len=16)

    fwd = jax.jit(functools.partial(mygpt_forward, num_heads=HEADS, vocab_size=VOCAB))
    out = jax.block_until_ready(fwd(seqs, params))
    assert out.shape == (B, S, VOCAB) and out.dtype == jnp.float32

    with jax.default_matmul_precision("highest"):
        ref = reference_forward(seqs, params, HEADS, VOCAB)
    np.testing.assert_allclose(np.asarray(out), np.asarray(ref), rtol=2e-2, atol=2e-2)

    print("KERNEL_OK")
</pallas_src>

<mosaic_0001>
module attributes {stable_mosaic.version = 11 : i64} {
  func.func @_decoder_kernel(%arg0: i32, %arg1: i32, %arg2: memref<8x32xf32, #tpu.memory_space<vmem>>, %arg3: memref<32x128xbf16, #tpu.memory_space<vmem>>, %arg4: memref<1x128xf32, #tpu.memory_space<vmem>>, %arg5: memref<8x128xf32, #tpu.memory_space<vmem>>) attributes {dimension_semantics = [#tpu.dimension_semantics<parallel>, #tpu.dimension_semantics<parallel>], iteration_bounds = array<i64: 2, 1>, scalar_prefetch = 0 : i64, scratch_operands = 0 : i64, tpu.core_type = #tpu.core_type<tc>, window_params = [{transform_indices = @transform_0, window_bounds = array<i64: 8, 32>}, {transform_indices = @transform_1, window_bounds = array<i64: 32, 128>}, {transform_indices = @transform_2, window_bounds = array<i64: 1, 128>}, {transform_indices = @transform_3, window_bounds = array<i64: 8, 128>}]} {
    %c0 = arith.constant 0 : index
    %c0_0 = arith.constant 0 : index
    %0 = vector.load %arg2[%c0, %c0_0] : memref<8x32xf32, #tpu.memory_space<vmem>>, vector<8x32xf32>
    %1 = arith.truncf %0 : vector<8x32xf32> to vector<8x32xbf16>
    %c0_1 = arith.constant 0 : index
    %c0_2 = arith.constant 0 : index
    %2 = vector.load %arg3[%c0_1, %c0_2] : memref<32x128xbf16, #tpu.memory_space<vmem>>, vector<32x128xbf16>
    %cst = arith.constant dense<0.000000e+00> : vector<8x128xf32>
    %3 = tpu.matmul %1, %2, %cst {dimension_numbers = #tpu.dot_dimension_numbers<[1], [0], [0], [1], [0, 0, 1, 1], [], []>} : vector<8x32xbf16>, vector<32x128xbf16>, vector<8x128xf32> -> vector<8x128xf32>
    %c0_3 = arith.constant 0 : index
    %c0_4 = arith.constant 0 : index
    %4 = vector.load %arg4[%c0_3, %c0_4] : memref<1x128xf32, #tpu.memory_space<vmem>>, vector<1x128xf32>
    %5 = vector.broadcast %4 : vector<1x128xf32> to vector<8x128xf32>
    %6 = arith.addf %3, %5 : vector<8x128xf32>
    %c0_5 = arith.constant 0 : index
    %c0_6 = arith.constant 0 : index
    %7 = vector.load %arg5[%c0_5, %c0_6] : memref<8x128xf32, #tpu.memory_space<vmem>>, vector<8x128xf32>
    tpu.vector_store %arg5[%c0_5, %c0_6], %6 {strides = array<i32>} : memref<8x128xf32, #tpu.memory_space<vmem>>, vector<8x128xf32>,
    return
  }
  func.func @transform_0(%arg0: i32, %arg1: i32) -> (i32, i32) {
    %c0_i32 = arith.constant 0 : i32
    %c0_i32_0 = arith.constant 0 : i32
    return %arg0, %c0_i32 : i32, i32
  }
  func.func @transform_1(%arg0: i32, %arg1: i32) -> (i32, i32) {
    %c0_i32 = arith.constant 0 : i32
    %c0_i32_0 = arith.constant 0 : i32
    return %c0_i32, %arg1 : i32, i32
  }
  func.func @transform_2(%arg0: i32, %arg1: i32) -> (i32, i32) {
    %c0_i32 = arith.constant 0 : i32
    %c0_i32_0 = arith.constant 0 : i32
    return %c0_i32, %arg1 : i32, i32
  }
  func.func @transform_3(%arg0: i32, %arg1: i32) -> (i32, i32) {
    %c0_i32 = arith.constant 0 : i32
    return %arg0, %arg1 : i32, i32
  }
}

module attributes {stable_mosaic.version = 11 : i64} {
  func.func @_encoder_kernel(%arg0: i32, %arg1: i32, %arg2: memref<1x8x32xf32, #tpu.memory_space<vmem>>, %arg3: memref<1x32xf32, #tpu.memory_space<vmem>>, %arg4: memref<1x32xf32, #tpu.memory_space<vmem>>, %arg5: memref<1x32x96xbf16, #tpu.memory_space<vmem>>, %arg6: memref<1x1x96xf32, #tpu.memory_space<vmem>>, %arg7: memref<1x32x32xbf16, #tpu.memory_space<vmem>>, %arg8: memref<1x1x32xf32, #tpu.memory_space<vmem>>, %arg9: memref<1x1x32xf32, #tpu.memory_space<vmem>>, %arg10: memref<1x1x32xf32, #tpu.memory_space<vmem>>, %arg11: memref<1x32x32xbf16, #tpu.memory_space<vmem>>, %arg12: memref<1x1x32xf32, #tpu.memory_space<vmem>>, %arg13: memref<1x32x32xbf16, #tpu.memory_space<vmem>>, %arg14: memref<1x1x32xf32, #tpu.memory_space<vmem>>, %arg15: memref<1x8x32xf32, #tpu.memory_space<vmem>>, %arg16: memref<8x32xf32, #tpu.memory_space<vmem>>) attributes {dimension_semantics = [#tpu.dimension_semantics<parallel>, #tpu.dimension_semantics<arbitrary>], iteration_bounds = array<i64: 2, 2>, scalar_prefetch = 0 : i64, scratch_operands = 1 : i64, tpu.core_type = #tpu.core_type<tc>, window_params = [{transform_indices = @transform_0, window_bounds = array<i64: 1, 8, 32>}, {pipeline_mode = #tpu.pipeline_mode<synchronous>, transform_indices = @transform_1, window_bounds = array<i64: 1, 32>}, {pipeline_mode = #tpu.pipeline_mode<synchronous>, transform_indices = @transform_2, window_bounds = array<i64: 1, 32>}, {transform_indices = @transform_3, window_bounds = array<i64: 1, 32, 96>}, {transform_indices = @transform_4, window_bounds = array<i64: 1, 1, 96>}, {transform_indices = @transform_5, window_bounds = array<i64: 1, 32, 32>}, {transform_indices = @transform_6, window_bounds = array<i64: 1, 1, 32>}, {transform_indices = @transform_7, window_bounds = array<i64: 1, 1, 32>}, {transform_indices = @transform_8, window_bounds = array<i64: 1, 1, 32>}, {transform_indices = @transform_9, window_bounds = array<i64: 1, 32, 32>}, {transform_indices = @transform_10, window_bounds = array<i64: 1, 1, 32>}, {transform_indices = @transform_11, window_bounds = array<i64: 1, 32, 32>}, {transform_indices = @transform_12, window_bounds = array<i64: 1, 1, 32>}, {transform_indices = @transform_13, window_bounds = array<i64: 1, 8, 32>}]} {
    %c0_i32 = arith.constant 0 : i32
    %0 = arith.cmpi eq, %arg1, %c0_i32 : i32
    %1 = arith.extui %0 : i1 to i32
    %c0_i32_0 = arith.constant 0 : i32
    %2 = arith.cmpi ne, %1, %c0_i32_0 : i32
    scf.if %2 {
      %c0_66 = arith.constant 0 : index
      %c0_67 = arith.constant 0 : index
      %c0_68 = arith.constant 0 : index
      %169 = vector.load %arg2[%c0_66, %c0_67, %c0_68] : memref<1x8x32xf32, #tpu.memory_space<vmem>>, vector<1x8x32xf32>
      %170 = vector.shape_cast %169 : vector<1x8x32xf32> to vector<8x32xf32>
      %c0_69 = arith.constant 0 : index
      %c0_70 = arith.constant 0 : index
      %171 = vector.load %arg3[%c0_69, %c0_70] : memref<1x32xf32, #tpu.memory_space<vmem>>, vector<1x32xf32>
      %c0_71 = arith.constant 0 : index
      %c0_72 = arith.constant 0 : index
      %172 = vector.load %arg4[%c0_71, %c0_72] : memref<1x32xf32, #tpu.memory_space<vmem>>, vector<1x32xf32>
      %cst_73 = arith.constant dense<0.000000e+00> : vector<8xf32>
      %173 = vector.multi_reduction <add>, %170, %cst_73 [1] : vector<8x32xf32> to vector<8xf32>
      %174 = vector.shape_cast %173 : vector<8xf32> to vector<8x1xf32>
      %cst_74 = arith.constant 3.200000e+01 : f32
      %175 = vector.broadcast %cst_74 : f32 to vector<8x1xf32>
      %176 = arith.divf %174, %175 : vector<8x1xf32>
      %177 = vector.broadcast %176 : vector<8x1xf32> to vector<8x32xf32>
      %178 = arith.subf %170, %177 : vector<8x32xf32>
      %179 = arith.mulf %178, %178 : vector<8x32xf32>
      %cst_75 = arith.constant dense<0.000000e+00> : vector<8xf32>
      %180 = vector.multi_reduction <add>, %179, %cst_75 [1] : vector<8x32xf32> to vector<8xf32>
      %181 = vector.shape_cast %180 : vector<8xf32> to vector<8x1xf32>
      %cst_76 = arith.constant 3.200000e+01 : f32
      %182 = vector.broadcast %cst_76 : f32 to vector<8x1xf32>
      %183 = arith.divf %181, %182 : vector<8x1xf32>
      %184 = vector.broadcast %176 : vector<8x1xf32> to vector<8x32xf32>
      %185 = arith.subf %170, %184 : vector<8x32xf32>
      %cst_77 = arith.constant 9.99999974E-6 : f32
      %186 = vector.broadcast %cst_77 : f32 to vector<8x1xf32>
      %187 = arith.addf %183, %186 : vector<8x1xf32>
      %188 = math.rsqrt %187 : vector<8x1xf32>
      %189 = vector.broadcast %188 : vector<8x1xf32> to vector<8x32xf32>
      %190 = arith.mulf %185, %189 : vector<8x32xf32>
      %191 = vector.broadcast %171 : vector<1x32xf32> to vector<8x32xf32>
      %192 = arith.mulf %190, %191 : vector<8x32xf32>
      %193 = vector.broadcast %172 : vector<1x32xf32> to vector<8x32xf32>
      %194 = arith.addf %192, %193 : vector<8x32xf32>
      %c0_78 = arith.constant 0 : index
      %c0_79 = arith.constant 0 : index
      %195 = vector.load %arg16[%c0_78, %c0_79] : memref<8x32xf32, #tpu.memory_space<vmem>>, vector<8x32xf32>
      tpu.vector_store %arg16[%c0_78, %c0_79], %194 {strides = array<i32>} : memref<8x32xf32, #tpu.memory_space<vmem>>, vector<8x32xf32>,
    } else {
    }
    %c0 = arith.constant 0 : index
    %c0_1 = arith.constant 0 : index
    %3 = vector.load %arg16[%c0, %c0_1] : memref<8x32xf32, #tpu.memory_space<vmem>>, vector<8x32xf32>
    %4 = arith.truncf %3 : vector<8x32xf32> to vector<8x32xbf16>
    %c0_2 = arith.constant 0 : index
    %c0_3 = arith.constant 0 : index
    %c0_4 = arith.constant 0 : index
    %5 = vector.load %arg5[%c0_2, %c0_3, %c0_4] : memref<1x32x96xbf16, #tpu.memory_space<vmem>>, vector<1x32x96xbf16>
    %6 = vector.shape_cast %5 : vector<1x32x96xbf16> to vector<32x96xbf16>
    %cst = arith.constant dense<0.000000e+00> : vector<8x96xf32>
    %7 = tpu.matmul %4, %6, %cst {dimension_numbers = #tpu.dot_dimension_numbers<[1], [0], [0], [1], [0, 0, 1, 1], [], []>} : vector<8x32xbf16>, vector<32x96xbf16>, vector<8x96xf32> -> vector<8x96xf32>
    %c0_5 = arith.constant 0 : index
    %c0_6 = arith.constant 0 : index
    %c0_7 = arith.constant 0 : index
    %8 = vector.load %arg6[%c0_5, %c0_6, %c0_7] : memref<1x1x96xf32, #tpu.memory_space<vmem>>, vector<1x1x96xf32>
    %9 = vector.shape_cast %8 : vector<1x1x96xf32> to vector<1x96xf32>
    %10 = vector.broadcast %9 : vector<1x96xf32> to vector<8x96xf32>
    %11 = arith.addf %7, %10 : vector<8x96xf32>
    %12 = vector.extract_strided_slice %11 {offsets = [0, 0], sizes = [8, 32], strides = [1, 1]} : vector<8x96xf32> to vector<8x32xf32>
    %cst_8 = arith.constant 0.353553385 : f32
    %13 = vector.broadcast %cst_8 : f32 to vector<8x32xf32>
    %14 = arith.mulf %12, %13 : vector<8x32xf32>
    %15 = arith.truncf %14 : vector<8x32xf32> to vector<8x32xbf16>
    %16 = vector.shape_cast %15 : vector<8x32xbf16> to vector<1x8x32xbf16>
    %17 = vector.extract_strided_slice %11 {offsets = [0, 32], sizes = [8, 32], strides = [1, 1]} : vector<8x96xf32> to vector<8x32xf32>
    %18 = arith.truncf %17 : vector<8x32xf32> to vector<8x32xbf16>
    %19 = vector.shape_cast %18 : vector<8x32xbf16> to vector<1x8x32xbf16>
    %20 = vector.extract_strided_slice %11 {offsets = [0, 64], sizes = [8, 32], strides = [1, 1]} : vector<8x96xf32> to vector<8x32xf32>
    %21 = arith.truncf %20 : vector<8x32xf32> to vector<8x32xbf16>
    %22 = vector.shape_cast %21 : vector<8x32xbf16> to vector<1x8x32xbf16>
    %23 = vector.extract_strided_slice %16 {offsets = [0, 0, 0], sizes = [1, 8, 8], strides = [1, 1, 1]} : vector<1x8x32xbf16> to vector<1x8x8xbf16>
    %24 = vector.extract_strided_slice %19 {offsets = [0, 0, 0], sizes = [1, 8, 8], strides = [1, 1, 1]} : vector<1x8x32xbf16> to vector<1x8x8xbf16>
    "tpu.trace_start"() <{level = 10 : i32, message = "bqd,bkd->bqk"}> : () -> ()
    %cst_9 = arith.constant dense<0.000000e+00> : vector<1x8x8xf32>
    %25 = tpu.matmul %23, %24, %cst_9 {dimension_numbers = #tpu.dot_dimension_numbers<[2], [2], [1], [1], [0, 0, 0, 1, 1, 1], [0], [0]>} : vector<1x8x8xbf16>, vector<1x8x8xbf16>, vector<1x8x8xf32> -> vector<1x8x8xf32>
    "tpu.trace_stop"() : () -> ()
    %cst_10 = arith.constant dense<0xFF800000> : vector<1x8xf32>
    %26 = vector.multi_reduction <maximumf>, %25, %cst_10 [2] : vector<1x8x8xf32> to vector<1x8xf32>
    %27 = vector.shape_cast %26 : vector<1x8xf32> to vector<1x8x1xf32>
    %28 = vector.broadcast %27 : vector<1x8x1xf32> to vector<1x8x8xf32>
    %29 = arith.subf %25, %28 : vector<1x8x8xf32>
    %30 = math.exp %29 : vector<1x8x8xf32>
    %cst_11 = arith.constant dense<0.000000e+00> : vector<1x8xf32>
    %31 = vector.multi_reduction <add>, %30, %cst_11 [2] : vector<1x8x8xf32> to vector<1x8xf32>
    %32 = vector.shape_cast %31 : vector<1x8xf32> to vector<1x8x1xf32>
    %33 = tpu.reciprocal %32 {approx = true} : vector<1x8x1xf32> -> vector<1x8x1xf32>
    %34 = vector.broadcast %33 : vector<1x8x1xf32> to vector<1x8x8xf32>
    %35 = arith.mulf %30, %34 : vector<1x8x8xf32>
    %36 = arith.truncf %35 : vector<1x8x8xf32> to vector<1x8x8xbf16>
    %37 = vector.extract_strided_slice %22 {offsets = [0, 0, 0], sizes = [1, 8, 8], strides = [1, 1, 1]} : vector<1x8x32xbf16> to vector<1x8x8xbf16>
    "tpu.trace_start"() <{level = 10 : i32, message = "bqk,bkd->bqd"}> : () -> ()
    %cst_12 = arith.constant dense<0.000000e+00> : vector<1x8x8xf32>
    %38 = tpu.matmul %36, %37, %cst_12 {dimension_numbers = #tpu.dot_dimension_numbers<[2], [1], [1], [2], [0, 0, 0, 1, 1, 2], [0], [0]>} : vector<1x8x8xbf16>, vector<1x8x8xbf16>, vector<1x8x8xf32> -> vector<1x8x8xf32>
    "tpu.trace_stop"() : () -> ()
    %39 = vector.extract_strided_slice %16 {offsets = [0, 0, 8], sizes = [1, 8, 8], strides = [1, 1, 1]} : vector<1x8x32xbf16> to vector<1x8x8xbf16>
    %40 = vector.extract_strided_slice %19 {offsets = [0, 0, 8], sizes = [1, 8, 8], strides = [1, 1, 1]} : vector<1x8x32xbf16> to vector<1x8x8xbf16>
    "tpu.trace_start"() <{level = 10 : i32, message = "bqd,bkd->bqk"}> : () -> ()
    %cst_13 = arith.constant dense<0.000000e+00> : vector<1x8x8xf32>
    %41 = tpu.matmul %39, %40, %cst_13 {dimension_numbers = #tpu.dot_dimension_numbers<[2], [2], [1], [1], [0, 0, 0, 1, 1, 1], [0], [0]>} : vector<1x8x8xbf16>, vector<1x8x8xbf16>, vector<1x8x8xf32> -> vector<1x8x8xf32>
    "tpu.trace_stop"() : () -> ()
    %cst_14 = arith.constant dense<0xFF800000> : vector<1x8xf32>
    %42 = vector.multi_reduction <maximumf>, %41, %cst_14 [2] : vector<1x8x8xf32> to vector<1x8xf32>
    %43 = vector.shape_cast %42 : vector<1x8xf32> to vector<1x8x1xf32>
    %44 = vector.broadcast %43 : vector<1x8x1xf32> to vector<1x8x8xf32>
    %45 = arith.subf %41, %44 : vector<1x8x8xf32>
    %46 = math.exp %45 : vector<1x8x8xf32>
    %cst_15 = arith.constant dense<0.000000e+00> : vector<1x8xf32>
    %47 = vector.multi_reduction <add>, %46, %cst_15 [2] : vector<1x8x8xf32> to vector<1x8xf32>
    %48 = vector.shape_cast %47 : vector<1x8xf32> to vector<1x8x1xf32>
    %49 = tpu.reciprocal %48 {approx = true} : vector<1x8x1xf32> -> vector<1x8x1xf32>
    %50 = vector.broadcast %49 : vector<1x8x1xf32> to vector<1x8x8xf32>
    %51 = arith.mulf %46, %50 : vector<1x8x8xf32>
    %52 = arith.truncf %51 : vector<1x8x8xf32> to vector<1x8x8xbf16>
    %53 = vector.extract_strided_slice %22 {offsets = [0, 0, 8], sizes = [1, 8, 8], strides = [1, 1, 1]} : vector<1x8x32xbf16> to vector<1x8x8xbf16>
    "tpu.trace_start"() <{level = 10 : i32, message = "bqk,bkd->bqd"}> : () -> ()
    %cst_16 = arith.constant dense<0.000000e+00> : vector<1x8x8xf32>
    %54 = tpu.matmul %52, %53, %cst_16 {dimension_numbers = #tpu.dot_dimension_numbers<[2], [1], [1], [2], [0, 0, 0, 1, 1, 2], [0], [0]>} : vector<1x8x8xbf16>, vector<1x8x8xbf16>, vector<1x8x8xf32> -> vector<1x8x8xf32>
    "tpu.trace_stop"() : () -> ()
    %55 = vector.extract_strided_slice %16 {offsets = [0, 0, 16], sizes = [1, 8, 8], strides = [1, 1, 1]} : vector<1x8x32xbf16> to vector<1x8x8xbf16>
    %56 = vector.extract_strided_slice %19 {offsets = [0, 0, 16], sizes = [1, 8, 8], strides = [1, 1, 1]} : vector<1x8x32xbf16> to vector<1x8x8xbf16>
    "tpu.trace_start"() <{level = 10 : i32, message = "bqd,bkd->bqk"}> : () -> ()
    %cst_17 = arith.constant dense<0.000000e+00> : vector<1x8x8xf32>
    %57 = tpu.matmul %55, %56, %cst_17 {dimension_numbers = #tpu.dot_dimension_numbers<[2], [2], [1], [1], [0, 0, 0, 1, 1, 1], [0], [0]>} : vector<1x8x8xbf16>, vector<1x8x8xbf16>, vector<1x8x8xf32> -> vector<1x8x8xf32>
    "tpu.trace_stop"() : () -> ()
    %cst_18 = arith.constant dense<0xFF800000> : vector<1x8xf32>
    %58 = vector.multi_reduction <maximumf>, %57, %cst_18 [2] : vector<1x8x8xf32> to vector<1x8xf32>
    %59 = vector.shape_cast %58 : vector<1x8xf32> to vector<1x8x1xf32>
    %60 = vector.broadcast %59 : vector<1x8x1xf32> to vector<1x8x8xf32>
    %61 = arith.subf %57, %60 : vector<1x8x8xf32>
    %62 = math.exp %61 : vector<1x8x8xf32>
    %cst_19 = arith.constant dense<0.000000e+00> : vector<1x8xf32>
    %63 = vector.multi_reduction <add>, %62, %cst_19 [2] : vector<1x8x8xf32> to vector<1x8xf32>
    %64 = vector.shape_cast %63 : vector<1x8xf32> to vector<1x8x1xf32>
    %65 = tpu.reciprocal %64 {approx = true} : vector<1x8x1xf32> -> vector<1x8x1xf32>
    %66 = vector.broadcast %65 : vector<1x8x1xf32> to vector<1x8x8xf32>
    %67 = arith.mulf %62, %66 : vector<1x8x8xf32>
    %68 = arith.truncf %67 : vector<1x8x8xf32> to vector<1x8x8xbf16>
    %69 = vector.extract_strided_slice %22 {offsets = [0, 0, 16], sizes = [1, 8, 8], strides = [1, 1, 1]} : vector<1x8x32xbf16> to vector<1x8x8xbf16>
    "tpu.trace_start"() <{level = 10 : i32, message = "bqk,bkd->bqd"}> : () -> ()
    %cst_20 = arith.constant dense<0.000000e+00> : vector<1x8x8xf32>
    %70 = tpu.matmul %68, %69, %cst_20 {dimension_numbers = #tpu.dot_dimension_numbers<[2], [1], [1], [2], [0, 0, 0, 1, 1, 2], [0], [0]>} : vector<1x8x8xbf16>, vector<1x8x8xbf16>, vector<1x8x8xf32> -> vector<1x8x8xf32>
    "tpu.trace_stop"() : () -> ()
    %71 = vector.extract_strided_slice %16 {offsets = [0, 0, 24], sizes = [1, 8, 8], strides = [1, 1, 1]} : vector<1x8x32xbf16> to vector<1x8x8xbf16>
    %72 = vector.extract_strided_slice %19 {offsets = [0, 0, 24], sizes = [1, 8, 8], strides = [1, 1, 1]} : vector<1x8x32xbf16> to vector<1x8x8xbf16>
    "tpu.trace_start"() <{level = 10 : i32, message = "bqd,bkd->bqk"}> : () -> ()
    %cst_21 = arith.constant dense<0.000000e+00> : vector<1x8x8xf32>
    %73 = tpu.matmul %71, %72, %cst_21 {dimension_numbers = #tpu.dot_dimension_numbers<[2], [2], [1], [1], [0, 0, 0, 1, 1, 1], [0], [0]>} : vector<1x8x8xbf16>, vector<1x8x8xbf16>, vector<1x8x8xf32> -> vector<1x8x8xf32>
    "tpu.trace_stop"() : () -> ()
    %cst_22 = arith.constant dense<0xFF800000> : vector<1x8xf32>
    %74 = vector.multi_reduction <maximumf>, %73, %cst_22 [2] : vector<1x8x8xf32> to vector<1x8xf32>
    %75 = vector.shape_cast %74 : vector<1x8xf32> to vector<1x8x1xf32>
    %76 = vector.broadcast %75 : vector<1x8x1xf32> to vector<1x8x8xf32>
    %77 = arith.subf %73, %76 : vector<1x8x8xf32>
    %78 = math.exp %77 : vector<1x8x8xf32>
    %cst_23 = arith.constant dense<0.000000e+00> : vector<1x8xf32>
    %79 = vector.multi_reduction <add>, %78, %cst_23 [2] : vector<1x8x8xf32> to vector<1x8xf32>
    %80 = vector.shape_cast %79 : vector<1x8xf32> to vector<1x8x1xf32>
    %81 = tpu.reciprocal %80 {approx = true} : vector<1x8x1xf32> -> vector<1x8x1xf32>
    %82 = vector.broadcast %81 : vector<1x8x1xf32> to vector<1x8x8xf32>
    %83 = arith.mulf %78, %82 : vector<1x8x8xf32>
    %84 = arith.truncf %83 : vector<1x8x8xf32> to vector<1x8x8xbf16>
    %85 = vector.extract_strided_slice %22 {offsets = [0, 0, 24], sizes = [1, 8, 8], strides = [1, 1, 1]} : vector<1x8x32xbf16> to vector<1x8x8xbf16>
    "tpu.trace_start"() <{level = 10 : i32, message = "bqk,bkd->bqd"}> : () -> ()
    %cst_24 = arith.constant dense<0.000000e+00> : vector<1x8x8xf32>
    %86 = tpu.matmul %84, %85, %cst_24 {dimension_numbers = #tpu.dot_dimension_numbers<[2], [1], [1], [2], [0, 0, 0, 1, 1, 2], [0], [0]>} : vector<1x8x8xbf16>, vector<1x8x8xbf16>, vector<1x8x8xf32> -> vector<1x8x8xf32>
    "tpu.trace_stop"() : () -> ()
    %87 = tpu.concatenate %38, %54, %70, %86 in 2 : vector<1x8x8xf32>, vector<1x8x8xf32>, vector<1x8x8xf32>, vector<1x8x8xf32> -> vector<1x8x32xf32>
    %88 = vector.shape_cast %87 : vector<1x8x32xf32> to vector<8x32xf32>
    %89 = arith.truncf %88 : vector<8x32xf32> to vector<8x32xbf16>
    %c0_25 = arith.constant 0 : index
    %c0_26 = arith.constant 0 : index
    %c0_27 = arith.constant 0 : index
    %90 = vector.load %arg7[%c0_25, %c0_26, %c0_27] : memref<1x32x32xbf16, #tpu.memory_space<vmem>>, vector<1x32x32xbf16>
    %91 = vector.shape_cast %90 : vector<1x32x32xbf16> to vector<32x32xbf16>
    %cst_28 = arith.constant dense<0.000000e+00> : vector<8x32xf32>
    %92 = tpu.matmul %89, %91, %cst_28 {dimension_numbers = #tpu.dot_dimension_numbers<[1], [0], [0], [1], [0, 0, 1, 1], [], []>} : vector<8x32xbf16>, vector<32x32xbf16>, vector<8x32xf32> -> vector<8x32xf32>
    %c0_29 = arith.constant 0 : index
    %c0_30 = arith.constant 0 : index
    %c0_31 = arith.constant 0 : index
    %93 = vector.load %arg8[%c0_29, %c0_30, %c0_31] : memref<1x1x32xf32, #tpu.memory_space<vmem>>, vector<1x1x32xf32>
    %94 = vector.shape_cast %93 : vector<1x1x32xf32> to vector<1x32xf32>
    %95 = vector.broadcast %94 : vector<1x32xf32> to vector<8x32xf32>
    %96 = arith.addf %92, %95 : vector<8x32xf32>
    %c0_32 = arith.constant 0 : index
    %c0_33 = arith.constant 0 : index
    %c0_34 = arith.constant 0 : index
    %97 = vector.load %arg9[%c0_32, %c0_33, %c0_34] : memref<1x1x32xf32, #tpu.memory_space<vmem>>, vector<1x1x32xf32>
    %98 = vector.shape_cast %97 : vector<1x1x32xf32> to vector<1x32xf32>
    %c0_35 = arith.constant 0 : index
    %c0_36 = arith.constant 0 : index
    %c0_37 = arith.constant 0 : index
    %99 = vector.load %arg10[%c0_35, %c0_36, %c0_37] : memref<1x1x32xf32, #tpu.memory_space<vmem>>, vector<1x1x32xf32>
    %100 = vector.shape_cast %99 : vector<1x1x32xf32> to vector<1x32xf32>
    %101 = arith.addf %3, %96 : vector<8x32xf32>
    %cst_38 = arith.constant dense<0.000000e+00> : vector<8xf32>
    %102 = vector.multi_reduction <add>, %101, %cst_38 [1] : vector<8x32xf32> to vector<8xf32>
    %103 = vector.shape_cast %102 : vector<8xf32> to vector<8x1xf32>
    %cst_39 = arith.constant 3.200000e+01 : f32
    %104 = vector.broadcast %cst_39 : f32 to vector<8x1xf32>
    %105 = arith.divf %103, %104 : vector<8x1xf32>
    %106 = vector.broadcast %105 : vector<8x1xf32> to vector<8x32xf32>
    %107 = arith.subf %101, %106 : vector<8x32xf32>
    %108 = arith.mulf %107, %107 : vector<8x32xf32>
    %cst_40 = arith.constant dense<0.000000e+00> : vector<8xf32>
    %109 = vector.multi_reduction <add>, %108, %cst_40 [1] : vector<8x32xf32> to vector<8xf32>
    %110 = vector.shape_cast %109 : vector<8xf32> to vector<8x1xf32>
    %cst_41 = arith.constant 3.200000e+01 : f32
    %111 = vector.broadcast %cst_41 : f32 to vector<8x1xf32>
    %112 = arith.divf %110, %111 : vector<8x1xf32>
    %113 = vector.broadcast %105 : vector<8x1xf32> to vector<8x32xf32>
    %114 = arith.subf %101, %113 : vector<8x32xf32>
    %cst_42 = arith.constant 9.99999974E-6 : f32
    %115 = vector.broadcast %cst_42 : f32 to vector<8x1xf32>
    %116 = arith.addf %112, %115 : vector<8x1xf32>
    %117 = math.rsqrt %116 : vector<8x1xf32>
    %118 = vector.broadcast %117 : vector<8x1xf32> to vector<8x32xf32>
    %119 = arith.mulf %114, %118 : vector<8x32xf32>
    %120 = vector.broadcast %98 : vector<1x32xf32> to vector<8x32xf32>
    %121 = arith.mulf %119, %120 : vector<8x32xf32>
    %122 = vector.broadcast %100 : vector<1x32xf32> to vector<8x32xf32>
    %123 = arith.addf %121, %122 : vector<8x32xf32>
    %124 = arith.truncf %123 : vector<8x32xf32> to vector<8x32xbf16>
    %c0_43 = arith.constant 0 : index
    %c0_44 = arith.constant 0 : index
    %c0_45 = arith.constant 0 : index
    %125 = vector.load %arg11[%c0_43, %c0_44, %c0_45] : memref<1x32x32xbf16, #tpu.memory_space<vmem>>, vector<1x32x32xbf16>
    %126 = vector.shape_cast %125 : vector<1x32x32xbf16> to vector<32x32xbf16>
    %cst_46 = arith.constant dense<0.000000e+00> : vector<8x32xf32>
    %127 = tpu.matmul %124, %126, %cst_46 {dimension_numbers = #tpu.dot_dimension_numbers<[1], [0], [0], [1], [0, 0, 1, 1], [], []>} : vector<8x32xbf16>, vector<32x32xbf16>, vector<8x32xf32> -> vector<8x32xf32>
    %c0_47 = arith.constant 0 : index
    %c0_48 = arith.constant 0 : index
    %c0_49 = arith.constant 0 : index
    %128 = vector.load %arg12[%c0_47, %c0_48, %c0_49] : memref<1x1x32xf32, #tpu.memory_space<vmem>>, vector<1x1x32xf32>
    %129 = vector.shape_cast %128 : vector<1x1x32xf32> to vector<1x32xf32>
    %130 = vector.broadcast %129 : vector<1x32xf32> to vector<8x32xf32>
    %131 = arith.addf %127, %130 : vector<8x32xf32>
    %cst_50 = arith.constant 0.000000e+00 : f32
    %132 = vector.broadcast %cst_50 : f32 to vector<8x32xf32>
    %133 = arith.maximumf %131, %132 : vector<8x32xf32>
    %134 = arith.truncf %133 : vector<8x32xf32> to vector<8x32xbf16>
    %c0_51 = arith.constant 0 : index
    %c0_52 = arith.constant 0 : index
    %c0_53 = arith.constant 0 : index
    %135 = vector.load %arg13[%c0_51, %c0_52, %c0_53] : memref<1x32x32xbf16, #tpu.memory_space<vmem>>, vector<1x32x32xbf16>
    %136 = vector.shape_cast %135 : vector<1x32x32xbf16> to vector<32x32xbf16>
    %cst_54 = arith.constant dense<0.000000e+00> : vector<8x32xf32>
    %137 = tpu.matmul %134, %136, %cst_54 {dimension_numbers = #tpu.dot_dimension_numbers<[1], [0], [0], [1], [0, 0, 1, 1], [], []>} : vector<8x32xbf16>, vector<32x32xbf16>, vector<8x32xf32> -> vector<8x32xf32>
    %c0_55 = arith.constant 0 : index
    %c0_56 = arith.constant 0 : index
    %c0_57 = arith.constant 0 : index
    %138 = vector.load %arg14[%c0_55, %c0_56, %c0_57] : memref<1x1x32xf32, #tpu.memory_space<vmem>>, vector<1x1x32xf32>
    %139 = vector.shape_cast %138 : vector<1x1x32xf32> to vector<1x32xf32>
    %140 = vector.broadcast %139 : vector<1x32xf32> to vector<8x32xf32>
    %141 = arith.addf %137, %140 : vector<8x32xf32>
    %142 = arith.addf %123, %141 : vector<8x32xf32>
    %cst_58 = arith.constant dense<0.000000e+00> : vector<8xf32>
    %143 = vector.multi_reduction <add>, %142, %cst_58 [1] : vector<8x32xf32> to vector<8xf32>
    %144 = vector.shape_cast %143 : vector<8xf32> to vector<8x1xf32>
    %cst_59 = arith.constant 3.200000e+01 : f32
    %145 = vector.broadcast %cst_59 : f32 to vector<8x1xf32>
    %146 = arith.divf %144, %145 : vector<8x1xf32>
    %147 = vector.broadcast %146 : vector<8x1xf32> to vector<8x32xf32>
    %148 = arith.subf %142, %147 : vector<8x32xf32>
    %149 = arith.mulf %148, %148 : vector<8x32xf32>
    %cst_60 = arith.constant dense<0.000000e+00> : vector<8xf32>
    %150 = vector.multi_reduction <add>, %149, %cst_60 [1] : vector<8x32xf32> to vector<8xf32>
    %151 = vector.shape_cast %150 : vector<8xf32> to vector<8x1xf32>
    %cst_61 = arith.constant 3.200000e+01 : f32
    %152 = vector.broadcast %cst_61 : f32 to vector<8x1xf32>
    %153 = arith.divf %151, %152 : vector<8x1xf32>
    %154 = vector.broadcast %146 : vector<8x1xf32> to vector<8x32xf32>
    %155 = arith.subf %142, %154 : vector<8x32xf32>
    %cst_62 = arith.constant 9.99999974E-6 : f32
    %156 = vector.broadcast %cst_62 : f32 to vector<8x1xf32>
    %157 = arith.addf %153, %156 : vector<8x1xf32>
    %158 = math.rsqrt %157 : vector<8x1xf32>
    %159 = vector.broadcast %158 : vector<8x1xf32> to vector<8x32xf32>
    %160 = arith.mulf %155, %159 : vector<8x32xf32>
    %161 = vector.broadcast %98 : vector<1x32xf32> to vector<8x32xf32>
    %162 = arith.mulf %160, %161 : vector<8x32xf32>
    %163 = vector.broadcast %100 : vector<1x32xf32> to vector<8x32xf32>
    %164 = arith.addf %162, %163 : vector<8x32xf32>
    %c0_63 = arith.constant 0 : index
    %c0_64 = arith.constant 0 : index
    %165 = vector.load %arg16[%c0_63, %c0_64] : memref<8x32xf32, #tpu.memory_space<vmem>>, vector<8x32xf32>
    tpu.vector_store %arg16[%c0_63, %c0_64], %164 {strides = array<i32>} : memref<8x32xf32, #tpu.memory_space<vmem>>, vector<8x32xf32>,
    %c1_i32 = arith.constant 1 : i32
    %166 = arith.cmpi eq, %arg1, %c1_i32 : i32
    %167 = arith.extui %166 : i1 to i32
    %c0_i32_65 = arith.constant 0 : i32
    %168 = arith.cmpi ne, %167, %c0_i32_65 : i32
    scf.if %168 {
      %169 = vector.shape_cast %164 : vector<8x32xf32> to vector<1x8x32xf32>
      %c0_66 = arith.constant 0 : index
      %c0_67 = arith.constant 0 : index
      %c0_68 = arith.constant 0 : index
      %170 = vector.load %arg15[%c0_66, %c0_67, %c0_68] : memref<1x8x32xf32, #tpu.memory_space<vmem>>, vector<1x8x32xf32>
      tpu.vector_store %arg15[%c0_66, %c0_67, %c0_68], %169 {strides = array<i32>} : memref<1x8x32xf32, #tpu.memory_space<vmem>>, vector<1x8x32xf32>,
    } else {
    }
    return
  }
  func.func @transform_0(%arg0: i32, %arg1: i32) -> (i32, i32, i32) {
    %c0_i32 = arith.constant 0 : i32
    %c0_i32_0 = arith.constant 0 : i32
    %c0_i32_1 = arith.constant 0 : i32
    return %arg0, %c0_i32, %c0_i32_0 : i32, i32, i32
  }
  func.func @transform_1(%arg0: i32, %arg1: i32) -> (i32, i32) {
    %c0_i32 = arith.constant 0 : i32
    %c0_i32_0 = arith.constant 0 : i32
    %c0_i32_1 = arith.constant 0 : i32
    return %c0_i32, %c0_i32_0 : i32, i32
  }
  func.func @transform_2(%arg0: i32, %arg1: i32) -> (i32, i32) {
    %c0_i32 = arith.constant 0 : i32
    %c0_i32_0 = arith.constant 0 : i32
    %c0_i32_1 = arith.constant 0 : i32
    return %c0_i32, %c0_i32_0 : i32, i32
  }
  func.func @transform_3(%arg0: i32, %arg1: i32) -> (i32, i32, i32) {
    %c0_i32 = arith.constant 0 : i32
    %c0_i32_0 = arith.constant 0 : i32
    %c0_i32_1 = arith.constant 0 : i32
    return %arg1, %c0_i32, %c0_i32_0 : i32, i32, i32
  }
  func.func @transform_4(%arg0: i32, %arg1: i32) -> (i32, i32, i32) {
    %c0_i32 = arith.constant 0 : i32
    %c0_i32_0 = arith.constant 0 : i32
    %c0_i32_1 = arith.constant 0 : i32
    return %arg1, %c0_i32, %c0_i32_0 : i32, i32, i32
  }
  func.func @transform_5(%arg0: i32, %arg1: i32) -> (i32, i32, i32) {
    %c0_i32 = arith.constant 0 : i32
    %c0_i32_0 = arith.constant 0 : i32
    %c0_i32_1 = arith.constant 0 : i32
    return %arg1, %c0_i32, %c0_i32_0 : i32, i32, i32
  }
  func.func @transform_6(%arg0: i32, %arg1: i32) -> (i32, i32, i32) {
    %c0_i32 = arith.constant 0 : i32
    %c0_i32_0 = arith.constant 0 : i32
    %c0_i32_1 = arith.constant 0 : i32
    return %arg1, %c0_i32, %c0_i32_0 : i32, i32, i32
  }
  func.func @transform_7(%arg0: i32, %arg1: i32) -> (i32, i32, i32) {
    %c0_i32 = arith.constant 0 : i32
    %c0_i32_0 = arith.constant 0 : i32
    %c0_i32_1 = arith.constant 0 : i32
    return %arg1, %c0_i32, %c0_i32_0 : i32, i32, i32
  }
  func.func @transform_8(%arg0: i32, %arg1: i32) -> (i32, i32, i32) {
    %c0_i32 = arith.constant 0 : i32
    %c0_i32_0 = arith.constant 0 : i32
    %c0_i32_1 = arith.constant 0 : i32
    return %arg1, %c0_i32, %c0_i32_0 : i32, i32, i32
  }
  func.func @transform_9(%arg0: i32, %arg1: i32) -> (i32, i32, i32) {
    %c0_i32 = arith.constant 0 : i32
    %c0_i32_0 = arith.constant 0 : i32
    %c0_i32_1 = arith.constant 0 : i32
    return %arg1, %c0_i32, %c0_i32_0 : i32, i32, i32
  }
  func.func @transform_10(%arg0: i32, %arg1: i32) -> (i32, i32, i32) {
    %c0_i32 = arith.constant 0 : i32
    %c0_i32_0 = arith.constant 0 : i32
    %c0_i32_1 = arith.constant 0 : i32
    return %arg1, %c0_i32, %c0_i32_0 : i32, i32, i32
  }
  func.func @transform_11(%arg0: i32, %arg1: i32) -> (i32, i32, i32) {
    %c0_i32 = arith.constant 0 : i32
    %c0_i32_0 = arith.constant 0 : i32
    %c0_i32_1 = arith.constant 0 : i32
    return %arg1, %c0_i32, %c0_i32_0 : i32, i32, i32
  }
  func.func @transform_12(%arg0: i32, %arg1: i32) -> (i32, i32, i32) {
    %c0_i32 = arith.constant 0 : i32
    %c0_i32_0 = arith.constant 0 : i32
    %c0_i32_1 = arith.constant 0 : i32
    return %arg1, %c0_i32, %c0_i32_0 : i32, i32, i32
  }
  func.func @transform_13(%arg0: i32, %arg1: i32) -> (i32, i32, i32) {
    %c0_i32 = arith.constant 0 : i32
    %c0_i32_0 = arith.constant 0 : i32
    %c0_i32_1 = arith.constant 0 : i32
    return %arg0, %c0_i32, %c0_i32_0 : i32, i32, i32
  }
}

</mosaic_0001>

<llo_original>
// kernel: mygpt_forward.3
$region0: #{mygpt_forward.3}
  #allocation0 [shape = 'u32[]', space=smem, size = 0x4, offset = 0x4, fixed_abs, tag = 'smem constant byte address 0x4 - core index']
  #allocation1 [shape = 'u32[72,128]{1,0:T(1,128)}', space=vmem, size = 0x9000, scoped, tag = 'internal scratch']
  %s0 = inlined_call_operand.vmem [shape: f32[16,32], index: 0, kind: input, shape index: {}]
  %s1 = inlined_call_operand.vmem [shape: bf16[32,128], index: 1, kind: input, shape index: {}]
  %s2 = inlined_call_operand.vmem [shape: f32[1,128], index: 2, kind: input, shape index: {}]
  %s3 = inlined_call_operand.hbm [shape: f32[16,128], index: 3, kind: output, shape index: {}]
  %s4 = sld [smem:[#allocation0]]
  $region45: #{mygpt_forward.3} parent=0
    _
  %s6 = ssub.s32 1, %s4
  %s7 = scalar_select 0, %s6, %s4
  $region1: #{mygpt_forward.3} parent=0
    #allocation2 [shape = 'u8[8192]{0}', space=vmem, size = 0x2000, scoped, tag = 'output window, operand 0']
    #allocation3 [shape = 's32[2]{0}', space=sflag, size = 0x8, scoped, tag = 'scoped memory for mygpt_forward.3']
    %8 = vsyncpa [#allocation3], 0
    %s9 = scalar_lea.sflag [#allocation3], 1
    %10 = vsyncpa %s9, 0
    loop: start=0, step=1, limit=4
    $region2: #{mygpt_forward.3} parent=1 // loop_pre_header
      _
    $region3: #{mygpt_forward.3} parent=1 // loop_header
      %s12 = sphi 0, %s16
      %p13 = scmp.ge.s32.totalorder %s12, 4
      %s19 = sphi 0, %s31
      %s20 = sphi 0, %s27
      %s21 = sphi 0, %s19
      %s22 = sphi 0, %s20
      %s23 = sphi 0, %s21
      %s24 = sphi 0, %s22
      %s34 = sphi 0, %s36
      %s37 = sphi 0, %s34
      %s38 = sphi 0, %s37
      %s54 = sphi 0, %s38
      %s60 = sphi 0, %s62
      %s63 = sphi 0, %s60
      %s64 = sphi 0, %s63
      %s80 = sphi 0, %s64
      %s86 = sphi 0, %s88
      %s89 = sphi 0, %s86
      %s90 = sphi 0, %s89
      %s106 = sphi 0, %s90
      %s114 = sphi 0, %s116
      %s117 = sphi 0, %s114
      %s118 = sphi 0, %s117
      %s134 = sphi 0, %s118
    $region4: #{mygpt_forward.3} parent=1 // loop_header_branch
      %15 = sbr.rel (%p13) target = $region8
    $region5: #{mygpt_forward.3} parent=1 // loop_body
      %s17 = ssub.s32 %s12, 1
      %s18 = ssub.s32 %s12, 2
      %s25 = sadd.s32 1, %s20
      %p26 = scmp.ge.s32.totalorder %s25, 1
      %s27 = scalar_select %p26, 0, %s25
      %s28 = sadd.s32 1, %s19
      %s29 = scalar_select %p26, %s28, %s19
      %p30 = scmp.ge.s32.totalorder %s29, 2
      %s31 = scalar_select %p30, 0, %s29
      %s32 = ssub.s32 %s19, %s31
      %p33 = scmp.eq.s32.totalorder %s32, 0
      %s35 = sadd.s32 %s34, 1
      %s36 = scalar_select %p33, %s34, %s35
      %p39 = pneg %p33
      %p40 = scmp.eq.s32.totalorder %s12, 1
      %p41 = por %p39, %p40
      %p42 = scmp.ne.s32.totalorder %s34, %s37
      %p43 = scmp.eq.s32.totalorder %s12, 0
      %p44 = por %p42, %p43
      %p45 = scmp.ne.s32.totalorder %s34, %s37
      %p46 = scmp.eq.s32.totalorder %s17, 1
      %p47 = por %p45, %p46
      %p48 = scmp.ne.s32.totalorder %s37, %s38
      %p49 = scmp.eq.s32.totalorder %s17, 0
      %p50 = por %p48, %p49
      %p51 = scmp.ne.s32.totalorder %s37, %s38
      %p52 = scmp.eq.s32.totalorder %s18, 1
      %p53 = por %p51, %p52
      %p55 = scmp.ne.s32.totalorder %s38, %s54
      %p56 = scmp.eq.s32.totalorder %s18, 0
      %p57 = por %p55, %p56
      %s58 = ssub.s32 %s20, %s27
      %p59 = scmp.eq.s32.totalorder %s58, 0
      %s61 = sadd.s32 %s60, 1
      %s62 = scalar_select %p59, %s60, %s61
      %p65 = pneg %p59
      %p66 = scmp.eq.s32.totalorder %s12, 1
      %p67 = por %p65, %p66
      %p68 = scmp.ne.s32.totalorder %s60, %s63
      %p69 = scmp.eq.s32.totalorder %s12, 0
      %p70 = por %p68, %p69
      %p71 = scmp.ne.s32.totalorder %s60, %s63
      %p72 = scmp.eq.s32.totalorder %s17, 1
      %p73 = por %p71, %p72
      %p74 = scmp.ne.s32.totalorder %s63, %s64
      %p75 = scmp.eq.s32.totalorder %s17, 0
      %p76 = por %p74, %p75
      %p77 = scmp.ne.s32.totalorder %s63, %s64
      %p78 = scmp.eq.s32.totalorder %s18, 1
      %p79 = por %p77, %p78
      %p81 = scmp.ne.s32.totalorder %s64, %s80
      %p82 = scmp.eq.s32.totalorder %s18, 0
      %p83 = por %p81, %p82
      %s84 = ssub.s32 %s20, %s27
      %p85 = scmp.eq.s32.totalorder %s84, 0
      %s87 = sadd.s32 %s86, 1
      %s88 = scalar_select %p85, %s86, %s87
      %p91 = pneg %p85
      %p92 = scmp.eq.s32.totalorder %s12, 1
      %p93 = por %p91, %p92
      %p94 = scmp.ne.s32.totalorder %s86, %s89
      %p95 = scmp.eq.s32.totalorder %s12, 0
      %p96 = por %p94, %p95
      %p97 = scmp.ne.s32.totalorder %s86, %s89
      %p98 = scmp.eq.s32.totalorder %s17, 1
      %p99 = por %p97, %p98
      %p100 = scmp.ne.s32.totalorder %s89, %s90
      %p101 = scmp.eq.s32.totalorder %s17, 0
      %p102 = por %p100, %p101
      %p103 = scmp.ne.s32.totalorder %s89, %s90
      %p104 = scmp.eq.s32.totalorder %s18, 1
      %p105 = por %p103, %p104
      %p107 = scmp.ne.s32.totalorder %s90, %s106
      %p108 = scmp.eq.s32.totalorder %s18, 0
      %p109 = por %p107, %p108
      %s110 = ssub.s32 %s19, %s31
      %s111 = ssub.s32 %s20, %s27
      %s112 = sor.u32 %s110, %s111
      %p113 = scmp.eq.s32.totalorder %s112, 0
      %s115 = sadd.s32 %s114, 1
      %s116 = scalar_select %p113, %s114, %s115
      %p119 = pneg %p113
      %p120 = scmp.eq.s32.totalorder %s12, 1
      %p121 = por %p119, %p120
      %p122 = scmp.ne.s32.totalorder %s114, %s117
      %p123 = scmp.eq.s32.totalorder %s12, 0
      %p124 = por %p122, %p123
      %p125 = scmp.ne.s32.totalorder %s114, %s117
      %p126 = scmp.eq.s32.totalorder %s17, 1
      %p127 = por %p125, %p126
      %p128 = scmp.ne.s32.totalorder %s117, %s118
      %p129 = scmp.eq.s32.totalorder %s17, 0
      %p130 = por %p128, %p129
      %p131 = scmp.ne.s32.totalorder %s117, %s118
      %p132 = scmp.eq.s32.totalorder %s18, 1
      %p133 = por %p131, %p132
      %p135 = scmp.ne.s32.totalorder %s118, %s134
      %p136 = scmp.eq.s32.totalorder %s18, 0
      %p137 = por %p135, %p136
      %p138 = scmp.le.s32.totalorder 1, %s12
      %p139 = scmp.lt.s32.totalorder %s12, 3
      %p140 = pnand %p138, %p139
      %p141 = pneg %p140
      // Predicated region
      $region9: #{mygpt_forward.3} parent=5 // pred_check
        _
      $region10: #{mygpt_forward.3} parent=5 // pred_check_branch
        %143 = sbr.rel (%p140) target = $region12
      $region11: #{mygpt_forward.3} parent=5 // pred_region
        %s144 = ssub.s32 %s12, 1
        // Predicated region
        $region13: #{mygpt_forward.3} parent=11 // pred_check
          %p145 = pneg %p76
        $region14: #{mygpt_forward.3} parent=11 // pred_check_branch
          %147 = sbr.rel (%p145) target = $region16
        $region15: #{mygpt_forward.3} parent=11 // pred_region
          %p148 = scmp.lt.s32.totalorder %s22, 0
          %s149 = scalar_select %p148, %s22, 0
          %s150 = smul.addr %s149, 4
          %s151 = scalar_lea.vmem %s1, %s150
        $region16: #{mygpt_forward.3} parent=11 // pred_fallthru
          _
        // Predicated region
        $region17: #{mygpt_forward.3} parent=11 // pred_check
          %p152 = pneg %p102
        $region18: #{mygpt_forward.3} parent=11 // pred_check_branch
          %154 = sbr.rel (%p152) target = $region20
        $region19: #{mygpt_forward.3} parent=11 // pred_region
          %p155 = scmp.lt.s32.totalorder %s22, 0
          %s156 = scalar_select %p155, %s22, 0
          %s157 = scalar_lea.vmem %s2, %s156
        $region20: #{mygpt_forward.3} parent=11 // pred_fallthru
          _
      $region12: #{mygpt_forward.3} parent=5 // pred_fallthru
        _
      %p158 = scmp.lt.s32.totalorder %s12, 2
      // Predicated region
      $region21: #{mygpt_forward.3} parent=5 // pred_check
        %p159 = pneg %p158
      $region22: #{mygpt_forward.3} parent=5 // pred_check_branch
        %161 = sbr.rel (%p159) target = $region24
      $region23: #{mygpt_forward.3} parent=5 // pred_region
        // Predicated region
        $region25: #{mygpt_forward.3} parent=23 // pred_check
          %p162 = pneg %p44
        $region26: #{mygpt_forward.3} parent=23 // pred_check_branch
          %164 = sbr.rel (%p162) target = $region28
        $region27: #{mygpt_forward.3} parent=23 // pred_region
          %p165 = scmp.lt.s32.totalorder %s19, 1
          %s166 = scalar_select %p165, %s19, 1
          %s167 = smul.addr %s166, 8
          %s168 = scalar_lea.vmem %s0, %s167
        $region28: #{mygpt_forward.3} parent=23 // pred_fallthru
          _
      $region24: #{mygpt_forward.3} parent=5 // pred_fallthru
        _
      %p169 = scmp.le.s32.totalorder 1, %s12
      %p170 = scmp.lt.s32.totalorder %s12, 3
      %p171 = pnand %p169, %p170
      %p172 = pneg %p171
      // Predicated region
      $region29: #{mygpt_forward.3} parent=5 // pred_check
        _
      $region30: #{mygpt_forward.3} parent=5 // pred_check_branch
        %174 = sbr.rel (%p171) target = $region32
      $region31: #{mygpt_forward.3} parent=5 // pred_region
        %s175 = ssub.s32 %s12, 1
        %p176 = scmp.lt.s32.totalorder %s21, 1
        %s177 = scalar_select %p176, %s21, 1
        %s178 = smul.addr %s177, 8
        %s179 = scalar_lea.vmem %s0, %s178
        %p180 = pneg %p50
        %p181 = pneg %p47
        %p182 = scmp.lt.s32.totalorder %s22, 0
        %s183 = scalar_select %p182, %s22, 0
        %s184 = smul.addr %s183, 4
        %s185 = scalar_lea.vmem %s1, %s184
        %p186 = pneg %p76
        %p187 = pneg %p73
        %p188 = scmp.lt.s32.totalorder %s22, 0
        %s189 = scalar_select %p188, %s22, 0
        %s190 = scalar_lea.vmem %s2, %s189
        %p191 = pneg %p102
        %p192 = pneg %p99
        %p193 = pneg %p130
        %p194 = pneg %p127
        %s195 = sand.u32 %s117, 1
        %s196 = scalar_lea.sflag [#allocation3], %s195
        %s197 = sand.u32 %s117, 1
        %s198 = smul.addr %s197, 8
        %s199 = scalar_lea.vmem [#allocation2], %s198
        %p200 = scmp.lt.s32.totalorder %s21, 1
        %s201 = scalar_select %p200, %s21, 1
        %s202 = smul.addr %s201, 8
        %s203 = scalar_lea.vmem %s0, %s202
        %p204 = scmp.lt.s32.totalorder %s22, 0
        %s205 = scalar_select %p204, %s22, 0
        %s206 = smul.addr %s205, 4
        %s207 = scalar_lea.vmem %s1, %s206
        %p208 = scmp.lt.s32.totalorder %s22, 0
        %s209 = scalar_select %p208, %s22, 0
        %s210 = scalar_lea.vmem %s2, %s209
        %v212 = vld [vmem:[%s203] sm:$0xff]
        %v213 = vpack.c.bf16 %v212, %v212
        %v214 = vld [vmem:[%s207] sm:$0xf]
        %v215 = vld [vmem:[%s207 + $0x4] sm:$0xf]
        %v216 = vld [vmem:[%s207 + $0x8] sm:$0xf]
        %v217 = vld [vmem:[%s207 + $0xc] sm:$0xf]
        %v218 = vld [vmem:[%s210] sm:$0x1]
        %v220 = vperm.slane %v218, 0
        %v226 = vunpack.c.l.b16 %v214
        %v227 = vunpack.c.l.b16 %v215
        %v228 = vunpack.c.l.b16 %v216
        %v229 = vunpack.c.l.b16 %v217
        %v230 = vpack.c.b16 %v227, %v226
        %v231 = vpack.c.b16 %v229, %v228
        %vm234 = vcmask 261120
        %v236 = vsel %vm234, %v213, 0
        %238 = vmatpush.bf16.msra.mxu0 0
        %239 = vmatpush.bf16.msra.mxu0 0
        %240 = vmatpush.bf16.msra.mxu0 0
        %241 = vmatpush.bf16.msra.mxu0 0
        %242 = vmatpush.bf16.msra.mxu0 0
        %243 = vmatpush.bf16.msra.mxu0 0
        %244 = vmatpush.bf16.msra.mxu0 %v231
        %245 = vmatpush.bf16.msra.mxu0 %v230
        %246 = vmatmul.bf16.gmra.mxu0 %v236
        %v247 = vpop.f32.mrf.mxu0
        %v248 = vadd.f32 %v220, %v247
        %v249 = vpop.f32.mrf.mxu0
        %250 = vdwg.mxu0
        %251 = vst [vmem:[%s199] sm:$0xff] %v248
        %s252 = sand.u32 %s117, 1
        %s253 = scalar_lea.sflag [#allocation3], %s252
        %s254 = sand.u32 %s117, 1
        %s255 = smul.addr %s254, 8
        %s256 = scalar_lea.vmem [#allocation2], %s255
        // Predicated region
        $region33: #{mygpt_forward.3} parent=31 // pred_check
          %p257 = pneg %p127
        $region34: #{mygpt_forward.3} parent=31 // pred_check_branch
          %259 = sbr.rel (%p257) target = $region36
        $region35: #{mygpt_forward.3} parent=31 // pred_region
          %261 = vsyncadd %s253, 0
          %s262 = sadd.s32 %s22, %s21
          %s263 = smul.addr %s262, 8
          %s264 = scalar_lea.hbm %s3, %s263
          %s266 = sshll.u32 %s256, 4
          %s267 = int_to_ptr.vmem [resolvable:$true] %s266
          %s268 = sshll.u32 %s264, 4
          %s269 = int_to_ptr.hbm [resolvable:$true] %s268
          %271 = dma.vmem_to_hbm [thread:$0]  %s267, 128, %s269, %s253
        $region36: #{mygpt_forward.3} parent=31 // pred_fallthru
          _
      $region32: #{mygpt_forward.3} parent=5 // pred_fallthru
        _
      %p272 = scmp.le.s32.totalorder 2, %s12
      // Predicated region
      $region37: #{mygpt_forward.3} parent=5 // pred_check
        %p273 = pneg %p272
      $region38: #{mygpt_forward.3} parent=5 // pred_check_branch
        %275 = sbr.rel (%p273) target = $region40
      $region39: #{mygpt_forward.3} parent=5 // pred_region
        %s276 = ssub.s32 %s12, 2
        // Predicated region
        $region41: #{mygpt_forward.3} parent=39 // pred_check
          %p277 = pneg %p133
        $region42: #{mygpt_forward.3} parent=39 // pred_check_branch
          %279 = sbr.rel (%p277) target = $region44
        $region43: #{mygpt_forward.3} parent=39 // pred_region
          %s280 = sand.u32 %s118, 1
          %s281 = scalar_lea.sflag [#allocation3], %s280
          %s282 = sand.u32 %s118, 1
          %s283 = smul.addr %s282, 8
          %s284 = scalar_lea.vmem [#allocation2], %s283
          %286 = dma.done %s281, 128
        $region44: #{mygpt_forward.3} parent=39 // pred_fallthru
          _
      $region40: #{mygpt_forward.3} parent=5 // pred_fallthru
        _
    $region6: #{mygpt_forward.3} parent=1 // loop_footer
      %s16 = sadd.s32 1, %s12
    $region7: #{mygpt_forward.3} parent=1 // loop_footer_branch
      %11 = sbr.rel target = $region3
    $region8: #{mygpt_forward.3} parent=1 // loop_exit
      _
    %287 = vsyncpa [#allocation3], 1
    %s288 = scalar_lea.sflag [#allocation3], 1
    %289 = vsyncpa %s288, 1

// kernel: mygpt_forward.2
$region0: #{mygpt_forward.2}
  #allocation0 [shape = 'u32[]', space=smem, size = 0x4, offset = 0x4, fixed_abs, tag = 'smem constant byte address 0x4 - core index']
  #allocation1 [shape = 'u32[72,128]{1,0:T(1,128)}', space=vmem, size = 0x9000, scoped, tag = 'internal scratch']
  #allocation2 [shape = 'f32[8,32]{1,0:T(8,128)}', space=vmem, size = 0x1000, scoped, tag = 'scratch operand']
  %s0 = inlined_call_operand.vmem [shape: f32[2,8,32], index: 0, kind: input, shape index: {}]
  %s1 = inlined_call_operand.vmem [shape: f32[1,32], index: 1, kind: input, shape index: {}]
  %s2 = inlined_call_operand.vmem [shape: f32[1,32], index: 2, kind: input, shape index: {}]
  %s3 = inlined_call_operand.vmem [shape: bf16[2,32,96], index: 3, kind: input, shape index: {}]
  %s4 = inlined_call_operand.vmem [shape: f32[2,1,96], index: 4, kind: input, shape index: {}]
  %s5 = inlined_call_operand.vmem [shape: bf16[2,32,32], index: 5, kind: input, shape index: {}]
  %s6 = inlined_call_operand.vmem [shape: f32[2,1,32], index: 6, kind: input, shape index: {}]
  %s7 = inlined_call_operand.vmem [shape: f32[2,1,32], index: 7, kind: input, shape index: {}]
  %s8 = inlined_call_operand.vmem [shape: f32[2,1,32], index: 8, kind: input, shape index: {}]
  %s9 = inlined_call_operand.vmem [shape: bf16[2,32,32], index: 9, kind: input, shape index: {}]
  %s10 = inlined_call_operand.vmem [shape: f32[2,1,32], index: 10, kind: input, shape index: {}]
  %s11 = inlined_call_operand.vmem [shape: bf16[2,32,32], index: 11, kind: input, shape index: {}]
  %s12 = inlined_call_operand.vmem [shape: f32[2,1,32], index: 12, kind: input, shape index: {}]
  %s13 = inlined_call_operand.vmem [shape: f32[2,8,32], index: 13, kind: output, shape index: {}]
  %s14 = sld [smem:[#allocation0]]
  $region93: #{mygpt_forward.2} parent=0
    _
  %s16 = ssub.s32 1, %s14
  %s17 = scalar_select 0, %s16, %s14
  loop: start=0, step=1, limit=6
  $region2: #{mygpt_forward.2} parent=0 // loop_pre_header
    _
  $region3: #{mygpt_forward.2} parent=0 // loop_header
    %s19 = sphi 0, %s23
    %p20 = scmp.ge.s32.totalorder %s19, 6
    %s26 = sphi 0, %s38
    %s27 = sphi 0, %s34
    %s28 = sphi 0, %s26
    %s29 = sphi 0, %s27
    %s30 = sphi 0, %s28
    %s31 = sphi 0, %s29
    %s41 = sphi 0, %s43
    %s44 = sphi 0, %s41
    %s45 = sphi 0, %s44
    %s61 = sphi 0, %s45
    %s65 = sphi 0, %s65
    %s67 = sphi 0, %s65
    %s68 = sphi 0, %s67
    %s82 = sphi 0, %s68
    %s86 = sphi 0, %s86
    %s88 = sphi 0, %s86
    %s89 = sphi 0, %s88
    %s103 = sphi 0, %s89
    %s109 = sphi 0, %s111
    %s112 = sphi 0, %s109
    %s113 = sphi 0, %s112
    %s129 = sphi 0, %s113
    %s135 = sphi 0, %s137
    %s138 = sphi 0, %s135
    %s139 = sphi 0, %s138
    %s155 = sphi 0, %s139
    %s161 = sphi 0, %s163
    %s164 = sphi 0, %s161
    %s165 = sphi 0, %s164
    %s181 = sphi 0, %s165
    %s187 = sphi 0, %s189
    %s190 = sphi 0, %s187
    %s191 = sphi 0, %s190
    %s207 = sphi 0, %s191
    %s213 = sphi 0, %s215
    %s216 = sphi 0, %s213
    %s217 = sphi 0, %s216
    %s233 = sphi 0, %s217
    %s239 = sphi 0, %s241
    %s242 = sphi 0, %s239
    %s243 = sphi 0, %s242
    %s259 = sphi 0, %s243
    %s265 = sphi 0, %s267
    %s268 = sphi 0, %s265
    %s269 = sphi 0, %s268
    %s285 = sphi 0, %s269
    %s291 = sphi 0, %s293
    %s294 = sphi 0, %s291
    %s295 = sphi 0, %s294
    %s311 = sphi 0, %s295
    %s317 = sphi 0, %s319
    %s320 = sphi 0, %s317
    %s321 = sphi 0, %s320
    %s337 = sphi 0, %s321
    %s343 = sphi 0, %s345
    %s346 = sphi 0, %s343
    %s347 = sphi 0, %s346
    %s363 = sphi 0, %s347
    %s369 = sphi 0, %s371
    %s372 = sphi 0, %s369
    %s373 = sphi 0, %s372
    %s389 = sphi 0, %s373
  $region4: #{mygpt_forward.2} parent=0 // loop_header_branch
    %22 = sbr.rel (%p20) target = $region8
  $region5: #{mygpt_forward.2} parent=0 // loop_body
    %s24 = ssub.s32 %s19, 1
    %s25 = ssub.s32 %s19, 2
    %s32 = sadd.s32 1, %s27
    %p33 = scmp.ge.s32.totalorder %s32, 2
    %s34 = scalar_select %p33, 0, %s32
    %s35 = sadd.s32 1, %s26
    %s36 = scalar_select %p33, %s35, %s26
    %p37 = scmp.ge.s32.totalorder %s36, 2
    %s38 = scalar_select %p37, 0, %s36
    %s39 = ssub.s32 %s26, %s38
    %p40 = scmp.eq.s32.totalorder %s39, 0
    %s42 = sadd.s32 %s41, 1
    %s43 = scalar_select %p40, %s41, %s42
    %p46 = pneg %p40
    %p47 = scmp.eq.s32.totalorder %s19, 3
    %p48 = por %p46, %p47
    %p49 = scmp.ne.s32.totalorder %s41, %s44
    %p50 = scmp.eq.s32.totalorder %s19, 0
    %p51 = por %p49, %p50
    %p52 = scmp.ne.s32.totalorder %s41, %s44
    %p53 = scmp.eq.s32.totalorder %s24, 3
    %p54 = por %p52, %p53
    %p55 = scmp.ne.s32.totalorder %s44, %s45
    %p56 = scmp.eq.s32.totalorder %s24, 0
    %p57 = por %p55, %p56
    %p58 = scmp.ne.s32.totalorder %s44, %s45
    %p59 = scmp.eq.s32.totalorder %s25, 3
    %p60 = por %p58, %p59
    %p62 = scmp.ne.s32.totalorder %s45, %s61
    %p63 = scmp.eq.s32.totalorder %s25, 0
    %p64 = por %p62, %p63
    %s66 = sadd.s32 %s65, 1
    %p69 = scmp.eq.s32.totalorder %s19, 3
    %p70 = scmp.ne.s32.totalorder %s65, %s67
    %p71 = scmp.eq.s32.totalorder %s19, 0
    %p72 = por %p70, %p71
    %p73 = scmp.ne.s32.totalorder %s65, %s67
    %p74 = scmp.eq.s32.totalorder %s24, 3
    %p75 = por %p73, %p74
    %p76 = scmp.ne.s32.totalorder %s67, %s68
    %p77 = scmp.eq.s32.totalorder %s24, 0
    %p78 = por %p76, %p77
    %p79 = scmp.ne.s32.totalorder %s67, %s68
    %p80 = scmp.eq.s32.totalorder %s25, 3
    %p81 = por %p79, %p80
    %p83 = scmp.ne.s32.totalorder %s68, %s82
    %p84 = scmp.eq.s32.totalorder %s25, 0
    %p85 = por %p83, %p84
    %s87 = sadd.s32 %s86, 1
    %p90 = scmp.eq.s32.totalorder %s19, 3
    %p91 = scmp.ne.s32.totalorder %s86, %s88
    %p92 = scmp.eq.s32.totalorder %s19, 0
    %p93 = por %p91, %p92
    %p94 = scmp.ne.s32.totalorder %s86, %s88
    %p95 = scmp.eq.s32.totalorder %s24, 3
    %p96 = por %p94, %p95
    %p97 = scmp.ne.s32.totalorder %s88, %s89
    %p98 = scmp.eq.s32.totalorder %s24, 0
    %p99 = por %p97, %p98
    %p100 = scmp.ne.s32.totalorder %s88, %s89
    %p101 = scmp.eq.s32.totalorder %s25, 3
    %p102 = por %p100, %p101
    %p104 = scmp.ne.s32.totalorder %s89, %s103
    %p105 = scmp.eq.s32.totalorder %s25, 0
    %p106 = por %p104, %p105
    %s107 = ssub.s32 %s27, %s34
    %p108 = scmp.eq.s32.totalorder %s107, 0
    %s110 = sadd.s32 %s109, 1
    %s111 = scalar_select %p108, %s109, %s110
    %p114 = pneg %p108
    %p115 = scmp.eq.s32.totalorder %s19, 3
    %p116 = por %p114, %p115
    %p117 = scmp.ne.s32.totalorder %s109, %s112
    %p118 = scmp.eq.s32.totalorder %s19, 0
    %p119 = por %p117, %p118
    %p120 = scmp.ne.s32.totalorder %s109, %s112
    %p121 = scmp.eq.s32.totalorder %s24, 3
    %p122 = por %p120, %p121
    %p123 = scmp.ne.s32.totalorder %s112, %s113
    %p124 = scmp.eq.s32.totalorder %s24, 0
    %p125 = por %p123, %p124
    %p126 = scmp.ne.s32.totalorder %s112, %s113
    %p127 = scmp.eq.s32.totalorder %s25, 3
    %p128 = por %p126, %p127
    %p130 = scmp.ne.s32.totalorder %s113, %s129
    %p131 = scmp.eq.s32.totalorder %s25, 0
    %p132 = por %p130, %p131
    %s133 = ssub.s32 %s27, %s34
    %p134 = scmp.eq.s32.totalorder %s133, 0
    %s136 = sadd.s32 %s135, 1
    %s137 = scalar_select %p134, %s135, %s136
    %p140 = pneg %p134
    %p141 = scmp.eq.s32.totalorder %s19, 3
    %p142 = por %p140, %p141
    %p143 = scmp.ne.s32.totalorder %s135, %s138
    %p144 = scmp.eq.s32.totalorder %s19, 0
    %p145 = por %p143, %p144
    %p146 = scmp.ne.s32.totalorder %s135, %s138
    %p147 = scmp.eq.s32.totalorder %s24, 3
    %p148 = por %p146, %p147
    %p149 = scmp.ne.s32.totalorder %s138, %s139
    %p150 = scmp.eq.s32.totalorder %s24, 0
    %p151 = por %p149, %p150
    %p152 = scmp.ne.s32.totalorder %s138, %s139
    %p153 = scmp.eq.s32.totalorder %s25, 3
    %p154 = por %p152, %p153
    %p156 = scmp.ne.s32.totalorder %s139, %s155
    %p157 = scmp.eq.s32.totalorder %s25, 0
    %p158 = por %p156, %p157
    %s159 = ssub.s32 %s27, %s34
    %p160 = scmp.eq.s32.totalorder %s159, 0
    %s162 = sadd.s32 %s161, 1
    %s163 = scalar_select %p160, %s161, %s162
    %p166 = pneg %p160
    %p167 = scmp.eq.s32.totalorder %s19, 3
    %p168 = por %p166, %p167
    %p169 = scmp.ne.s32.totalorder %s161, %s164
    %p170 = scmp.eq.s32.totalorder %s19, 0
    %p171 = por %p169, %p170
    %p172 = scmp.ne.s32.totalorder %s161, %s164
    %p173 = scmp.eq.s32.totalorder %s24, 3
    %p174 = por %p172, %p173
    %p175 = scmp.ne.s32.totalorder %s164, %s165
    %p176 = scmp.eq.s32.totalorder %s24, 0
    %p177 = por %p175, %p176
    %p178 = scmp.ne.s32.totalorder %s164, %s165
    %p179 = scmp.eq.s32.totalorder %s25, 3
    %p180 = por %p178, %p179
    %p182 = scmp.ne.s32.totalorder %s165, %s181
    %p183 = scmp.eq.s32.totalorder %s25, 0
    %p184 = por %p182, %p183
    %s185 = ssub.s32 %s27, %s34
    %p186 = scmp.eq.s32.totalorder %s185, 0
    %s188 = sadd.s32 %s187, 1
    %s189 = scalar_select %p186, %s187, %s188
    %p192 = pneg %p186
    %p193 = scmp.eq.s32.totalorder %s19, 3
    %p194 = por %p192, %p193
    %p195 = scmp.ne.s32.totalorder %s187, %s190
    %p196 = scmp.eq.s32.totalorder %s19, 0
    %p197 = por %p195, %p196
    %p198 = scmp.ne.s32.totalorder %s187, %s190
    %p199 = scmp.eq.s32.totalorder %s24, 3
    %p200 = por %p198, %p199
    %p201 = scmp.ne.s32.totalorder %s190, %s191
    %p202 = scmp.eq.s32.totalorder %s24, 0
    %p203 = por %p201, %p202
    %p204 = scmp.ne.s32.totalorder %s190, %s191
    %p205 = scmp.eq.s32.totalorder %s25, 3
    %p206 = por %p204, %p205
    %p208 = scmp.ne.s32.totalorder %s191, %s207
    %p209 = scmp.eq.s32.totalorder %s25, 0
    %p210 = por %p208, %p209
    %s211 = ssub.s32 %s27, %s34
    %p212 = scmp.eq.s32.totalorder %s211, 0
    %s214 = sadd.s32 %s213, 1
    %s215 = scalar_select %p212, %s213, %s214
    %p218 = pneg %p212
    %p219 = scmp.eq.s32.totalorder %s19, 3
    %p220 = por %p218, %p219
    %p221 = scmp.ne.s32.totalorder %s213, %s216
    %p222 = scmp.eq.s32.totalorder %s19, 0
    %p223 = por %p221, %p222
    %p224 = scmp.ne.s32.totalorder %s213, %s216
    %p225 = scmp.eq.s32.totalorder %s24, 3
    %p226 = por %p224, %p225
    %p227 = scmp.ne.s32.totalorder %s216, %s217
    %p228 = scmp.eq.s32.totalorder %s24, 0
    %p229 = por %p227, %p228
    %p230 = scmp.ne.s32.totalorder %s216, %s217
    %p231 = scmp.eq.s32.totalorder %s25, 3
    %p232 = por %p230, %p231
    %p234 = scmp.ne.s32.totalorder %s217, %s233
    %p235 = scmp.eq.s32.totalorder %s25, 0
    %p236 = por %p234, %p235
    %s237 = ssub.s32 %s27, %s34
    %p238 = scmp.eq.s32.totalorder %s237, 0
    %s240 = sadd.s32 %s239, 1
    %s241 = scalar_select %p238, %s239, %s240
    %p244 = pneg %p238
    %p245 = scmp.eq.s32.totalorder %s19, 3
    %p246 = por %p244, %p245
    %p247 = scmp.ne.s32.totalorder %s239, %s242
    %p248 = scmp.eq.s32.totalorder %s19, 0
    %p249 = por %p247, %p248
    %p250 = scmp.ne.s32.totalorder %s239, %s242
    %p251 = scmp.eq.s32.totalorder %s24, 3
    %p252 = por %p250, %p251
    %p253 = scmp.ne.s32.totalorder %s242, %s243
    %p254 = scmp.eq.s32.totalorder %s24, 0
    %p255 = por %p253, %p254
    %p256 = scmp.ne.s32.totalorder %s242, %s243
    %p257 = scmp.eq.s32.totalorder %s25, 3
    %p258 = por %p256, %p257
    %p260 = scmp.ne.s32.totalorder %s243, %s259
    %p261 = scmp.eq.s32.totalorder %s25, 0
    %p262 = por %p260, %p261
    %s263 = ssub.s32 %s27, %s34
    %p264 = scmp.eq.s32.totalorder %s263, 0
    %s266 = sadd.s32 %s265, 1
    %s267 = scalar_select %p264, %s265, %s266
    %p270 = pneg %p264
    %p271 = scmp.eq.s32.totalorder %s19, 3
    %p272 = por %p270, %p271
    %p273 = scmp.ne.s32.totalorder %s265, %s268
    %p274 = scmp.eq.s32.totalorder %s19, 0
    %p275 = por %p273, %p274
    %p276 = scmp.ne.s32.totalorder %s265, %s268
    %p277 = scmp.eq.s32.totalorder %s24, 3
    %p278 = por %p276, %p277
    %p279 = scmp.ne.s32.totalorder %s268, %s269
    %p280 = scmp.eq.s32.totalorder %s24, 0
    %p281 = por %p279, %p280
    %p282 = scmp.ne.s32.totalorder %s268, %s269
    %p283 = scmp.eq.s32.totalorder %s25, 3
    %p284 = por %p282, %p283
    %p286 = scmp.ne.s32.totalorder %s269, %s285
    %p287 = scmp.eq.s32.totalorder %s25, 0
    %p288 = por %p286, %p287
    %s289 = ssub.s32 %s27, %s34
    %p290 = scmp.eq.s32.totalorder %s289, 0
    %s292 = sadd.s32 %s291, 1
    %s293 = scalar_select %p290, %s291, %s292
    %p296 = pneg %p290
    %p297 = scmp.eq.s32.totalorder %s19, 3
    %p298 = por %p296, %p297
    %p299 = scmp.ne.s32.totalorder %s291, %s294
    %p300 = scmp.eq.s32.totalorder %s19, 0
    %p301 = por %p299, %p300
    %p302 = scmp.ne.s32.totalorder %s291, %s294
    %p303 = scmp.eq.s32.totalorder %s24, 3
    %p304 = por %p302, %p303
    %p305 = scmp.ne.s32.totalorder %s294, %s295
    %p306 = scmp.eq.s32.totalorder %s24, 0
    %p307 = por %p305, %p306
    %p308 = scmp.ne.s32.totalorder %s294, %s295
    %p309 = scmp.eq.s32.totalorder %s25, 3
    %p310 = por %p308, %p309
    %p312 = scmp.ne.s32.totalorder %s295, %s311
    %p313 = scmp.eq.s32.totalorder %s25, 0
    %p314 = por %p312, %p313
    %s315 = ssub.s32 %s27, %s34
    %p316 = scmp.eq.s32.totalorder %s315, 0
    %s318 = sadd.s32 %s317, 1
    %s319 = scalar_select %p316, %s317, %s318
    %p322 = pneg %p316
    %p323 = scmp.eq.s32.totalorder %s19, 3
    %p324 = por %p322, %p323
    %p325 = scmp.ne.s32.totalorder %s317, %s320
    %p326 = scmp.eq.s32.totalorder %s19, 0
    %p327 = por %p325, %p326
    %p328 = scmp.ne.s32.totalorder %s317, %s320
    %p329 = scmp.eq.s32.totalorder %s24, 3
    %p330 = por %p328, %p329
    %p331 = scmp.ne.s32.totalorder %s320, %s321
    %p332 = scmp.eq.s32.totalorder %s24, 0
    %p333 = por %p331, %p332
    %p334 = scmp.ne.s32.totalorder %s320, %s321
    %p335 = scmp.eq.s32.totalorder %s25, 3
    %p336 = por %p334, %p335
    %p338 = scmp.ne.s32.totalorder %s321, %s337
    %p339 = scmp.eq.s32.totalorder %s25, 0
    %p340 = por %p338, %p339
    %s341 = ssub.s32 %s27, %s34
    %p342 = scmp.eq.s32.totalorder %s341, 0
    %s344 = sadd.s32 %s343, 1
    %s345 = scalar_select %p342, %s343, %s344
    %p348 = pneg %p342
    %p349 = scmp.eq.s32.totalorder %s19, 3
    %p350 = por %p348, %p349
    %p351 = scmp.ne.s32.totalorder %s343, %s346
    %p352 = scmp.eq.s32.totalorder %s19, 0
    %p353 = por %p351, %p352
    %p354 = scmp.ne.s32.totalorder %s343, %s346
    %p355 = scmp.eq.s32.totalorder %s24, 3
    %p356 = por %p354, %p355
    %p357 = scmp.ne.s32.totalorder %s346, %s347
    %p358 = scmp.eq.s32.totalorder %s24, 0
    %p359 = por %p357, %p358
    %p360 = scmp.ne.s32.totalorder %s346, %s347
    %p361 = scmp.eq.s32.totalorder %s25, 3
    %p362 = por %p360, %p361
    %p364 = scmp.ne.s32.totalorder %s347, %s363
    %p365 = scmp.eq.s32.totalorder %s25, 0
    %p366 = por %p364, %p365
    %s367 = ssub.s32 %s26, %s38
    %p368 = scmp.eq.s32.totalorder %s367, 0
    %s370 = sadd.s32 %s369, 1
    %s371 = scalar_select %p368, %s369, %s370
    %p374 = pneg %p368
    %p375 = scmp.eq.s32.totalorder %s19, 3
    %p376 = por %p374, %p375
    %p377 = scmp.ne.s32.totalorder %s369, %s372
    %p378 = scmp.eq.s32.totalorder %s19, 0
    %p379 = por %p377, %p378
    %p380 = scmp.ne.s32.totalorder %s369, %s372
    %p381 = scmp.eq.s32.totalorder %s24, 3
    %p382 = por %p380, %p381
    %p383 = scmp.ne.s32.totalorder %s372, %s373
    %p384 = scmp.eq.s32.totalorder %s24, 0
    %p385 = por %p383, %p384
    %p386 = scmp.ne.s32.totalorder %s372, %s373
    %p387 = scmp.eq.s32.totalorder %s25, 3
    %p388 = por %p386, %p387
    %p390 = scmp.ne.s32.totalorder %s373, %s389
    %p391 = scmp.eq.s32.totalorder %s25, 0
    %p392 = por %p390, %p391
    %p393 = scmp.le.s32.totalorder 1, %s19
    %p394 = scmp.lt.s32.totalorder %s19, 5
    %p395 = pnand %p393, %p394
    %p396 = pneg %p395
    // Predicated region
    $region9: #{mygpt_forward.2} parent=5 // pred_check
      _
    $region10: #{mygpt_forward.2} parent=5 // pred_check_branch
      %398 = sbr.rel (%p395) target = $region12
    $region11: #{mygpt_forward.2} parent=5 // pred_region
      %s399 = ssub.s32 %s19, 1
      // Predicated region
      $region13: #{mygpt_forward.2} parent=11 // pred_check
        %p400 = pneg %p78
      $region14: #{mygpt_forward.2} parent=11 // pred_check_branch
        %402 = sbr.rel (%p400) target = $region16
      $region15: #{mygpt_forward.2} parent=11 // pred_region
        _
      $region16: #{mygpt_forward.2} parent=11 // pred_fallthru
        _
      // Predicated region
      $region17: #{mygpt_forward.2} parent=11 // pred_check
        %p403 = pneg %p99
      $region18: #{mygpt_forward.2} parent=11 // pred_check_branch
        %405 = sbr.rel (%p403) target = $region20
      $region19: #{mygpt_forward.2} parent=11 // pred_region
        _
      $region20: #{mygpt_forward.2} parent=11 // pred_fallthru
        _
    $region12: #{mygpt_forward.2} parent=5 // pred_fallthru
      _
    %p406 = scmp.lt.s32.totalorder %s19, 4
    // Predicated region
    $region21: #{mygpt_forward.2} parent=5 // pred_check
      %p407 = pneg %p406
    $region22: #{mygpt_forward.2} parent=5 // pred_check_branch
      %409 = sbr.rel (%p407) target = $region24
    $region23: #{mygpt_forward.2} parent=5 // pred_region
      // Predicated region
      $region25: #{mygpt_forward.2} parent=23 // pred_check
        %p410 = pneg %p51
      $region26: #{mygpt_forward.2} parent=23 // pred_check_branch
        %412 = sbr.rel (%p410) target = $region28
      $region27: #{mygpt_forward.2} parent=23 // pred_region
        %p413 = scmp.lt.s32.totalorder %s26, 1
        %s414 = scalar_select %p413, %s26, 1
        %s415 = smul.addr %s414, 8
        %s416 = scalar_lea.vmem %s0, %s415
      $region28: #{mygpt_forward.2} parent=23 // pred_fallthru
        _
      // Predicated region
      $region29: #{mygpt_forward.2} parent=23 // pred_check
        %p417 = pneg %p119
      $region30: #{mygpt_forward.2} parent=23 // pred_check_branch
        %419 = sbr.rel (%p417) target = $region32
      $region31: #{mygpt_forward.2} parent=23 // pred_region
        %p420 = scmp.lt.s32.totalorder %s27, 1
        %s421 = scalar_select %p420, %s27, 1
        %s422 = smul.addr %s421, 4
        %s423 = smul.addr %s422, 4
        %s424 = scalar_lea.vmem %s3, %s423
      $region32: #{mygpt_forward.2} parent=23 // pred_fallthru
        _
      // Predicated region
      $region33: #{mygpt_forward.2} parent=23 // pred_check
        %p425 = pneg %p145
      $region34: #{mygpt_forward.2} parent=23 // pred_check_branch
        %427 = sbr.rel (%p425) target = $region36
      $region35: #{mygpt_forward.2} parent=23 // pred_region
        %p428 = scmp.lt.s32.totalorder %s27, 1
        %s429 = scalar_select %p428, %s27, 1
        %s430 = scalar_lea.vmem %s4, %s429
      $region36: #{mygpt_forward.2} parent=23 // pred_fallthru
        _
      // Predicated region
      $region37: #{mygpt_forward.2} parent=23 // pred_check
        %p431 = pneg %p171
      $region38: #{mygpt_forward.2} parent=23 // pred_check_branch
        %433 = sbr.rel (%p431) target = $region40
      $region39: #{mygpt_forward.2} parent=23 // pred_region
        %p434 = scmp.lt.s32.totalorder %s27, 1
        %s435 = scalar_select %p434, %s27, 1
        %s436 = smul.addr %s435, 4
        %s437 = smul.addr %s436, 4
        %s438 = scalar_lea.vmem %s5, %s437
      $region40: #{mygpt_forward.2} parent=23 // pred_fallthru
        _
      // Predicated region
      $region41: #{mygpt_forward.2} parent=23 // pred_check
        %p439 = pneg %p197
      $region42: #{mygpt_forward.2} parent=23 // pred_check_branch
        %441 = sbr.rel (%p439) target = $region44
      $region43: #{mygpt_forward.2} parent=23 // pred_region
        %p442 = scmp.lt.s32.totalorder %s27, 1
        %s443 = scalar_select %p442, %s27, 1
        %s444 = scalar_lea.vmem %s6, %s443
      $region44: #{mygpt_forward.2} parent=23 // pred_fallthru
        _
      // Predicated region
      $region45: #{mygpt_forward.2} parent=23 // pred_check
        %p445 = pneg %p223
      $region46: #{mygpt_forward.2} parent=23 // pred_check_branch
        %447 = sbr.rel (%p445) target = $region48
      $region47: #{mygpt_forward.2} parent=23 // pred_region
        %p448 = scmp.lt.s32.totalorder %s27, 1
        %s449 = scalar_select %p448, %s27, 1
        %s450 = scalar_lea.vmem %s7, %s449
      $region48: #{mygpt_forward.2} parent=23 // pred_fallthru
        _
      // Predicated region
      $region49: #{mygpt_forward.2} parent=23 // pred_check
        %p451 = pneg %p249
      $region50: #{mygpt_forward.2} parent=23 // pred_check_branch
        %453 = sbr.rel (%p451) target = $region52
      $region51: #{mygpt_forward.2} parent=23 // pred_region
        %p454 = scmp.lt.s32.totalorder %s27, 1
        %s455 = scalar_select %p454, %s27, 1
        %s456 = scalar_lea.vmem %s8, %s455
      $region52: #{mygpt_forward.2} parent=23 // pred_fallthru
        _
      // Predicated region
      $region53: #{mygpt_forward.2} parent=23 // pred_check
        %p457 = pneg %p275
      $region54: #{mygpt_forward.2} parent=23 // pred_check_branch
        %459 = sbr.rel (%p457) target = $region56
      $region55: #{mygpt_forward.2} parent=23 // pred_region
        %p460 = scmp.lt.s32.totalorder %s27, 1
        %s461 = scalar_select %p460, %s27, 1
        %s462 = smul.addr %s461, 4
        %s463 = smul.addr %s462, 4
        %s464 = scalar_lea.vmem %s9, %s463
      $region56: #{mygpt_forward.2} parent=23 // pred_fallthru
        _
      // Predicated region
      $region57: #{mygpt_forward.2} parent=23 // pred_check
        %p465 = pneg %p301
      $region58: #{mygpt_forward.2} parent=23 // pred_check_branch
        %467 = sbr.rel (%p465) target = $region60
      $region59: #{mygpt_forward.2} parent=23 // pred_region
        %p468 = scmp.lt.s32.totalorder %s27, 1
        %s469 = scalar_select %p468, %s27, 1
        %s470 = scalar_lea.vmem %s10, %s469
      $region60: #{mygpt_forward.2} parent=23 // pred_fallthru
        _
      // Predicated region
      $region61: #{mygpt_forward.2} parent=23 // pred_check
        %p471 = pneg %p327
      $region62: #{mygpt_forward.2} parent=23 // pred_check_branch
        %473 = sbr.rel (%p471) target = $region64
      $region63: #{mygpt_forward.2} parent=23 // pred_region
        %p474 = scmp.lt.s32.totalorder %s27, 1
        %s475 = scalar_select %p474, %s27, 1
        %s476 = smul.addr %s475, 4
        %s477 = smul.addr %s476, 4
        %s478 = scalar_lea.vmem %s11, %s477
      $region64: #{mygpt_forward.2} parent=23 // pred_fallthru
        _
      // Predicated region
      $region65: #{mygpt_forward.2} parent=23 // pred_check
        %p479 = pneg %p353
      $region66: #{mygpt_forward.2} parent=23 // pred_check_branch
        %481 = sbr.rel (%p479) target = $region68
      $region67: #{mygpt_forward.2} parent=23 // pred_region
        %p482 = scmp.lt.s32.totalorder %s27, 1
        %s483 = scalar_select %p482, %s27, 1
        %s484 = scalar_lea.vmem %s12, %s483
      $region68: #{mygpt_forward.2} parent=23 // pred_fallthru
        _
    $region24: #{mygpt_forward.2} parent=5 // pred_fallthru
      _
    %p485 = scmp.le.s32.totalorder 1, %s19
    %p486 = scmp.lt.s32.totalorder %s19, 5
    %p487 = pnand %p485, %p486
    %p488 = pneg %p487
    // Predicated region
    $region69: #{mygpt_forward.2} parent=5 // pred_check
      _
    $region70: #{mygpt_forward.2} parent=5 // pred_check_branch
      %490 = sbr.rel (%p487) target = $region72
    $region71: #{mygpt_forward.2} parent=5 // pred_region
      %s491 = ssub.s32 %s19, 1
      %p492 = scmp.lt.s32.totalorder %s28, 1
      %s493 = scalar_select %p492, %s28, 1
      %s494 = smul.addr %s493, 8
      %s495 = scalar_lea.vmem %s0, %s494
      %p496 = pneg %p57
      %p497 = pneg %p54
      %p498 = pneg %p78
      %p499 = pneg %p75
      %p500 = pneg %p99
      %p501 = pneg %p96
      %p502 = scmp.lt.s32.totalorder %s29, 1
      %s503 = scalar_select %p502, %s29, 1
      %s504 = smul.addr %s503, 4
      %s505 = smul.addr %s504, 4
      %s506 = scalar_lea.vmem %s3, %s505
      %p507 = pneg %p125
      %p508 = pneg %p122
      %p509 = scmp.lt.s32.totalorder %s29, 1
      %s510 = scalar_select %p509, %s29, 1
      %s511 = scalar_lea.vmem %s4, %s510
      %p512 = pneg %p151
      %p513 = pneg %p148
      %p514 = scmp.lt.s32.totalorder %s29, 1
      %s515 = scalar_select %p514, %s29, 1
      %s516 = smul.addr %s515, 4
      %s517 = smul.addr %s516, 4
      %s518 = scalar_lea.vmem %s5, %s517
      %p519 = pneg %p177
      %p520 = pneg %p174
      %p521 = scmp.lt.s32.totalorder %s29, 1
      %s522 = scalar_select %p521, %s29, 1
      %s523 = scalar_lea.vmem %s6, %s522
      %p524 = pneg %p203
      %p525 = pneg %p200
      %p526 = scmp.lt.s32.totalorder %s29, 1
      %s527 = scalar_select %p526, %s29, 1
      %s528 = scalar_lea.vmem %s7, %s527
      %p529 = pneg %p229
      %p530 = pneg %p226
      %p531 = scmp.lt.s32.totalorder %s29, 1
      %s532 = scalar_select %p531, %s29, 1
      %s533 = scalar_lea.vmem %s8, %s532
      %p534 = pneg %p255
      %p535 = pneg %p252
      %p536 = scmp.lt.s32.totalorder %s29, 1
      %s537 = scalar_select %p536, %s29, 1
      %s538 = smul.addr %s537, 4
      %s539 = smul.addr %s538, 4
      %s540 = scalar_lea.vmem %s9, %s539
      %p541 = pneg %p281
      %p542 = pneg %p278
      %p543 = scmp.lt.s32.totalorder %s29, 1
      %s544 = scalar_select %p543, %s29, 1
      %s545 = scalar_lea.vmem %s10, %s544
      %p546 = pneg %p307
      %p547 = pneg %p304
      %p548 = scmp.lt.s32.totalorder %s29, 1
      %s549 = scalar_select %p548, %s29, 1
      %s550 = smul.addr %s549, 4
      %s551 = smul.addr %s550, 4
      %s552 = scalar_lea.vmem %s11, %s551
      %p553 = pneg %p333
      %p554 = pneg %p330
      %p555 = scmp.lt.s32.totalorder %s29, 1
      %s556 = scalar_select %p555, %s29, 1
      %s557 = scalar_lea.vmem %s12, %s556
      %p558 = pneg %p359
      %p559 = pneg %p356
      %p560 = pneg %p385
      %p561 = pneg %p382
      %p562 = scmp.lt.s32.totalorder %s28, 1
      %s563 = scalar_select %p562, %s28, 1
      %s564 = smul.addr %s563, 8
      %s565 = scalar_lea.vmem %s13, %s564
      %p566 = scmp.lt.s32.totalorder %s28, 1
      %s567 = scalar_select %p566, %s28, 1
      %s568 = smul.addr %s567, 8
      %s569 = scalar_lea.vmem %s0, %s568
      %p570 = scmp.lt.s32.totalorder %s29, 1
      %s571 = scalar_select %p570, %s29, 1
      %s572 = smul.addr %s571, 4
      %s573 = smul.addr %s572, 4
      %s574 = scalar_lea.vmem %s3, %s573
      %p575 = scmp.lt.s32.totalorder %s29, 1
      %s576 = scalar_select %p575, %s29, 1
      %s577 = scalar_lea.vmem %s4, %s576
      %p578 = scmp.lt.s32.totalorder %s29, 1
      %s579 = scalar_select %p578, %s29, 1
      %s580 = smul.addr %s579, 4
      %s581 = smul.addr %s580, 4
      %s582 = scalar_lea.vmem %s5, %s581
      %p583 = scmp.lt.s32.totalorder %s29, 1
      %s584 = scalar_select %p583, %s29, 1
      %s585 = scalar_lea.vmem %s6, %s584
      %p586 = scmp.lt.s32.totalorder %s29, 1
      %s587 = scalar_select %p586, %s29, 1
      %s588 = scalar_lea.vmem %s7, %s587
      %p589 = scmp.lt.s32.totalorder %s29, 1
      %s590 = scalar_select %p589, %s29, 1
      %s591 = scalar_lea.vmem %s8, %s590
      %p592 = scmp.lt.s32.totalorder %s29, 1
      %s593 = scalar_select %p592, %s29, 1
      %s594 = smul.addr %s593, 4
      %s595 = smul.addr %s594, 4
      %s596 = scalar_lea.vmem %s9, %s595
      %p597 = scmp.lt.s32.totalorder %s29, 1
      %s598 = scalar_select %p597, %s29, 1
      %s599 = scalar_lea.vmem %s10, %s598
      %p600 = scmp.lt.s32.totalorder %s29, 1
      %s601 = scalar_select %p600, %s29, 1
      %s602 = smul.addr %s601, 4
      %s603 = smul.addr %s602, 4
      %s604 = scalar_lea.vmem %s11, %s603
      %p605 = scmp.lt.s32.totalorder %s29, 1
      %s606 = scalar_select %p605, %s29, 1
      %s607 = scalar_lea.vmem %s12, %s606
      %p608 = scmp.lt.s32.totalorder %s28, 1
      %s609 = scalar_select %p608, %s28, 1
      %s610 = smul.addr %s609, 8
      %s611 = scalar_lea.vmem %s13, %s610
      %p613 = scmp.eq.s32.totalorder %s29, 0
      // Predicated region
      $region73: #{mygpt_forward.2} parent=71 // pred_check
        %p614 = pneg %p613
      $region74: #{mygpt_forward.2} parent=71 // pred_check_branch
        %616 = sbr.rel (%p614) target = $region76
      $region75: #{mygpt_forward.2} parent=71 // pred_region
        %v617 = vld [vmem:[%s569] sm:$0xff]
        %v618 = vld [vmem:[%s1] sm:$0x1]
        %v619 = vld [vmem:[%s2] sm:$0x1]
        %vm620 = vcmask 261120
        %v621 = vsel %vm620, %v617, 0.0
        %622 = vadd.xlane.f32.xlu0 %v621
        %v623 = vpop.xlane.xlu0 %622
        %v624 = vrcp.pop 32.0
        %v625 = vmul.f32 32.0, %v624
        %v626 = vsub.f32 1.0, %v625
        %v627 = vmul.f32 %v624, %v626
        %v628 = vadd.f32 %v624, %v627
        %vm629 = vweird.f32 %v624
        %v630 = vsel %vm629, %v624, %v628
        %v631 = vmul.f32 %v623, %v630
        %v632 = vsub.f32 %v617, %v631
        %v633 = vmul.f32 %v632, %v632
        %v634 = vsel %vm620, %v633, 0.0
        %635 = vadd.xlane.f32.xlu0 %v634
        %v636 = vpop.xlane.xlu0 %635
        %v637 = vmul.f32 %v636, %v630
        %v638 = vadd.f32 %v637, 1e-05
        %v639 = vrsqrt.pop %v638
        %v640 = vmul.f32 %v639, %v638
        %v641 = vmul.f32 %v640, %v639
        %v642 = vmul.f32 0.5, %v641
        %v643 = vsub.f32 1.5, %v642
        %v644 = vmul.f32 %v639, %v643
        %vm645 = vweird.f32 %v638
        %vm646 = vweird.f32 %v639
        %vm647 = vmor %vm645, %vm646
        %v648 = vsel %vm647, %v639, %v644
        %v649 = vmul.f32 %v632, %v648
        %v651 = vperm.slane %v618, 0
        %v653 = vmul.f32 %v649, %v651
        %v655 = vperm.slane %v619, 0
        %v657 = vadd.f32 %v653, %v655
        %658 = vst.msk [vmem:[#allocation2] sm:$0xff] %vm620, %v657
      $region76: #{mygpt_forward.2} parent=71 // pred_fallthru
        _
      %v659 = vld [vmem:[#allocation2] sm:$0xff]
      %v660 = vpack.c.bf16 %v659, %v659
      %v661 = vld [vmem:[%s574] sm:$0xf]
      %v662 = vld [vmem:[%s574 + $0x4] sm:$0xf]
      %v663 = vld [vmem:[%s574 + $0x8] sm:$0xf]
      %v664 = vld [vmem:[%s574 + $0xc] sm:$0xf]
      %v665 = vld [vmem:[%s577] sm:$0x1]
      %v667 = vperm.slane %v665, 0
      %v673 = vunpack.c.l.b16 %v661
      %v674 = vunpack.c.l.b16 %v662
      %v675 = vunpack.c.l.b16 %v663
      %v676 = vunpack.c.l.b16 %v664
      %v677 = vpack.c.b16 %v674, %v673
      %v678 = vpack.c.b16 %v676, %v675
      %vm681 = vcmask 261120
      %v683 = vsel %vm681, %v660, 0
      %685 = vmatpush.bf16.msra.mxu0 0
      %686 = vmatpush.bf16.msra.mxu0 0
      %687 = vmatpush.bf16.msra.mxu0 0
      %688 = vmatpush.bf16.msra.mxu0 0
      %689 = vmatpush.bf16.msra.mxu0 0
      %690 = vmatpush.bf16.msra.mxu0 0
      %691 = vmatpush.bf16.msra.mxu0 %v678
      %692 = vmatpush.bf16.msra.mxu0 %v677
      %693 = vmatmul.bf16.gmra.mxu0 %v683
      %v694 = vpop.f32.mrf.mxu0
      %v695 = vadd.f32 %v667, %v694
      %v696 = vpop.f32.mrf.mxu0
      %697 = vdwg.mxu0
      %v698 = vmul.f32 %v695, 0.35355338
      %v699 = vpack.c.bf16 %v698, %v698
      %v700 = vpack.c.bf16 %v695, %v695
      %v702 = vunpack.c.l.b16 %v700
      %v703 = vpack.c.b16 %v702, %v702
      %704 = vrot.lane.b32.xlu0 %v703, 96
      %v705 = vpop.permute.xlu0 %704
      %vm706 = vcmask 64512
      %v708 = vsel %vm706, %v699, 0
      %v711 = vsel %vm706, %v705, 0
      %713 = vmatpush.bf16.xpose.msra.mxu0 0
      %714 = vmatpush.bf16.xpose.msra.mxu0 0
      %715 = vmatpush.bf16.xpose.msra.mxu0 0
      %716 = vmatpush.bf16.xpose.msra.mxu0 0
      %717 = vmatpush.bf16.xpose.msra.mxu0 0
      %718 = vmatpush.bf16.xpose.msra.mxu0 0
      %719 = vmatpush.bf16.xpose.msra.mxu0 0
      %720 = vmatpush.bf16.xpose.msra.mxu0 %v711
      %721 = vmatmul.bf16.gmra.mxu0 %v708
      %v722 = vpop.f32.mrf.mxu0
      %v723 = vadd.f32 0.0, %v722
      %v724 = vpop.f32.mrf.mxu0
      %725 = vdwg.mxu0
      %v726 = vsel %vm706, %v723, -inf
      %727 = vmax.xlane.f32.xlu0 %v726
      %v728 = vpop.xlane.xlu0 %727
      %v729 = vsub.f32 %v723, %v728
      %v730 = vmul.f32 %v729, 1.442695
      %v731 = vpow.pop %v730
      %v732 = vsel %vm706, %v731, 0.0
      %733 = vadd.xlane.f32.xlu0 %v732
      %v734 = vpop.xlane.xlu0 %733
      %v735 = vrcp.pop %v734
      %v736 = vmul.f32 %v731, %v735
      %v737 = vpack.c.bf16 %v736, %v736
      %738 = vrot.lane.b32.xlu0 %v703, 64
      %v739 = vpop.permute.xlu0 %738
      %v741 = vsel %vm706, %v737, 0
      %vm743 = vcmask 1043456
      %v745 = vsel %vm743, %v739, 0
      %747 = vmatpush.bf16.msra.mxu0 0
      %748 = vmatpush.bf16.msra.mxu0 0
      %749 = vmatpush.bf16.msra.mxu0 0
      %750 = vmatpush.bf16.msra.mxu0 0
      %751 = vmatpush.bf16.msra.mxu0 0
      %752 = vmatpush.bf16.msra.mxu0 0
      %753 = vmatpush.bf16.msra.mxu0 0
      %754 = vmatpush.bf16.msra.mxu0 %v745
      %755 = vmatmul.bf16.gmra.mxu0 %v741
      %v756 = vpop.f32.mrf.mxu0
      %v757 = vadd.f32 0.0, %v756
      %v758 = vpop.f32.mrf.mxu0
      %759 = vdwg.mxu0
      %v761 = vunpack.c.l.b16 %v699
      %v762 = vpack.c.b16 %v761, %v761
      %763 = vrot.lane.b32.xlu0 %v762, 120
      %v764 = vpop.permute.xlu0 %763
      %765 = vrot.lane.b32.xlu0 %v703, 88
      %v766 = vpop.permute.xlu0 %765
      %v768 = vsel %vm706, %v764, 0
      %v771 = vsel %vm706, %v766, 0
      %773 = vmatpush.bf16.xpose.msra.mxu0 0
      %774 = vmatpush.bf16.xpose.msra.mxu0 0
      %775 = vmatpush.bf16.xpose.msra.mxu0 0
      %776 = vmatpush.bf16.xpose.msra.mxu0 0
      %777 = vmatpush.bf16.xpose.msra.mxu0 0
      %778 = vmatpush.bf16.xpose.msra.mxu0 0
      %779 = vmatpush.bf16.xpose.msra.mxu0 0
      %780 = vmatpush.bf16.xpose.msra.mxu0 %v771
      %781 = vmatmul.bf16.gmra.mxu0 %v768
      %v782 = vpop.f32.mrf.mxu0
      %v783 = vadd.f32 0.0, %v782
      %v784 = vpop.f32.mrf.mxu0
      %785 = vdwg.mxu0
      %v786 = vsel %vm706, %v783, -inf
      %787 = vmax.xlane.f32.xlu0 %v786
      %v788 = vpop.xlane.xlu0 %787
      %v789 = vsub.f32 %v783, %v788
      %v790 = vmul.f32 %v789, 1.442695
      %v791 = vpow.pop %v790
      %v792 = vsel %vm706, %v791, 0.0
      %793 = vadd.xlane.f32.xlu0 %v792
      %v794 = vpop.xlane.xlu0 %793
      %v795 = vrcp.pop %v794
      %v796 = vmul.f32 %v791, %v795
      %v797 = vpack.c.bf16 %v796, %v796
      %798 = vrot.lane.b32.xlu0 %v703, 56
      %v799 = vpop.permute.xlu0 %798
      %v801 = vsel %vm706, %v797, 0
      %v804 = vsel %vm743, %v799, 0
      %806 = vmatpush.bf16.msra.mxu0 0
      %807 = vmatpush.bf16.msra.mxu0 0
      %808 = vmatpush.bf16.msra.mxu0 0
      %809 = vmatpush.bf16.msra.mxu0 0
      %810 = vmatpush.bf16.msra.mxu0 0
      %811 = vmatpush.bf16.msra.mxu0 0
      %812 = vmatpush.bf16.msra.mxu0 0
      %813 = vmatpush.bf16.msra.mxu0 %v804
      %814 = vmatmul.bf16.gmra.mxu0 %v801
      %v815 = vpop.f32.mrf.mxu0
      %v816 = vadd.f32 0.0, %v815
      %v817 = vpop.f32.mrf.mxu0
      %818 = vdwg.mxu0
      %819 = vrot.lane.b32.xlu0 %v762, 112
      %v820 = vpop.permute.xlu0 %819
      %821 = vrot.lane.b32.xlu0 %v703, 80
      %v822 = vpop.permute.xlu0 %821
      %v824 = vsel %vm706, %v820, 0
      %v827 = vsel %vm706, %v822, 0
      %829 = vmatpush.bf16.xpose.msra.mxu0 0
      %830 = vmatpush.bf16.xpose.msra.mxu0 0
      %831 = vmatpush.bf16.xpose.msra.mxu0 0
      %832 = vmatpush.bf16.xpose.msra.mxu0 0
      %833 = vmatpush.bf16.xpose.msra.mxu0 0
      %834 = vmatpush.bf16.xpose.msra.mxu0 0
      %835 = vmatpush.bf16.xpose.msra.mxu0 0
      %836 = vmatpush.bf16.xpose.msra.mxu0 %v827
      %837 = vmatmul.bf16.gmra.mxu0 %v824
      %v838 = vpop.f32.mrf.mxu0
      %v839 = vadd.f32 0.0, %v838
      %v840 = vpop.f32.mrf.mxu0
      %841 = vdwg.mxu0
      %v842 = vsel %vm706, %v839, -inf
      %843 = vmax.xlane.f32.xlu0 %v842
      %v844 = vpop.xlane.xlu0 %843
      %v845 = vsub.f32 %v839, %v844
      %v846 = vmul.f32 %v845, 1.442695
      %v847 = vpow.pop %v846
      %v848 = vsel %vm706, %v847, 0.0
      %849 = vadd.xlane.f32.xlu0 %v848
      %v850 = vpop.xlane.xlu0 %849
      %v851 = vrcp.pop %v850
      %v852 = vmul.f32 %v847, %v851
      %v853 = vpack.c.bf16 %v852, %v852
      %854 = vrot.lane.b32.xlu0 %v703, 48
      %v855 = vpop.permute.xlu0 %854
      %v857 = vsel %vm706, %v853, 0
      %v860 = vsel %vm743, %v855, 0
      %862 = vmatpush.bf16.msra.mxu0 0
      %863 = vmatpush.bf16.msra.mxu0 0
      %864 = vmatpush.bf16.msra.mxu0 0
      %865 = vmatpush.bf16.msra.mxu0 0
      %866 = vmatpush.bf16.msra.mxu0 0
      %867 = vmatpush.bf16.msra.mxu0 0
      %868 = vmatpush.bf16.msra.mxu0 0
      %869 = vmatpush.bf16.msra.mxu0 %v860
      %870 = vmatmul.bf16.gmra.mxu0 %v857
      %v871 = vpop.f32.mrf.mxu0
      %v872 = vadd.f32 0.0, %v871
      %v873 = vpop.f32.mrf.mxu0
      %874 = vdwg.mxu0
      %875 = vrot.lane.b32.xlu0 %v762, 104
      %v876 = vpop.permute.xlu0 %875
      %877 = vrot.lane.b32.xlu0 %v703, 72
      %v878 = vpop.permute.xlu0 %877
      %v880 = vsel %vm706, %v876, 0
      %v883 = vsel %vm706, %v878, 0
      %885 = vmatpush.bf16.xpose.msra.mxu0 0
      %886 = vmatpush.bf16.xpose.msra.mxu0 0
      %887 = vmatpush.bf16.xpose.msra.mxu0 0
      %888 = vmatpush.bf16.xpose.msra.mxu0 0
      %889 = vmatpush.bf16.xpose.msra.mxu0 0
      %890 = vmatpush.bf16.xpose.msra.mxu0 0
      %891 = vmatpush.bf16.xpose.msra.mxu0 0
      %892 = vmatpush.bf16.xpose.msra.mxu0 %v883
      %893 = vmatmul.bf16.gmra.mxu0 %v880
      %v894 = vpop.f32.mrf.mxu0
      %v895 = vadd.f32 0.0, %v894
      %v896 = vpop.f32.mrf.mxu0
      %897 = vdwg.mxu0
      %v898 = vsel %vm706, %v895, -inf
      %899 = vmax.xlane.f32.xlu0 %v898
      %v900 = vpop.xlane.xlu0 %899
      %v901 = vsub.f32 %v895, %v900
      %v902 = vmul.f32 %v901, 1.442695
      %v903 = vpow.pop %v902
      %v904 = vsel %vm706, %v903, 0.0
      %905 = vadd.xlane.f32.xlu0 %v904
      %v906 = vpop.xlane.xlu0 %905
      %v907 = vrcp.pop %v906
      %v908 = vmul.f32 %v903, %v907
      %v909 = vpack.c.bf16 %v908, %v908
      %910 = vrot.lane.b32.xlu0 %v703, 40
      %v911 = vpop.permute.xlu0 %910
      %v913 = vsel %vm706, %v909, 0
      %v916 = vsel %vm743, %v911, 0
      %918 = vmatpush.bf16.msra.mxu0 0
      %919 = vmatpush.bf16.msra.mxu0 0
      %920 = vmatpush.bf16.msra.mxu0 0
      %921 = vmatpush.bf16.msra.mxu0 0
      %922 = vmatpush.bf16.msra.mxu0 0
      %923 = vmatpush.bf16.msra.mxu0 0
      %924 = vmatpush.bf16.msra.mxu0 0
      %925 = vmatpush.bf16.msra.mxu0 %v916
      %926 = vmatmul.bf16.gmra.mxu0 %v913
      %v927 = vpop.f32.mrf.mxu0
      %v928 = vadd.f32 0.0, %v927
      %v929 = vpop.f32.mrf.mxu0
      %930 = vdwg.mxu0
      %932 = vrot.lane.b32.xlu0 %v816, 8
      %v933 = vpop.permute.xlu0 %932
      %936 = vrot.lane.b32.xlu0 %v872, 16
      %v937 = vpop.permute.xlu0 %936
      %940 = vrot.lane.b32.xlu0 %v928, 24
      %v941 = vpop.permute.xlu0 %940
      %v943 = vsel %vm706, %v757, %v933
      %vm944 = vcmask 130048
      %v945 = vsel %vm944, %v943, %v937
      %vm946 = vcmask 195584
      %v947 = vsel %vm946, %v945, %v941
      %v948 = vpack.c.bf16 %v947, %v947
      %v949 = vld [vmem:[%s582] sm:$0xf]
      %v950 = vld [vmem:[%s582 + $0x4] sm:$0xf]
      %v951 = vld [vmem:[%s582 + $0x8] sm:$0xf]
      %v952 = vld [vmem:[%s582 + $0xc] sm:$0xf]
      %v953 = vld [vmem:[%s585] sm:$0x1]
      %v955 = vperm.slane %v953, 0
      %v961 = vunpack.c.l.b16 %v949
      %v962 = vunpack.c.l.b16 %v950
      %v963 = vunpack.c.l.b16 %v951
      %v964 = vunpack.c.l.b16 %v952
      %v965 = vpack.c.b16 %v962, %v961
      %v966 = vpack.c.b16 %v964, %v963
      %v970 = vsel %vm681, %v948, 0
      %972 = vmatpush.bf16.msra.mxu0 0
      %973 = vmatpush.bf16.msra.mxu0 0
      %974 = vmatpush.bf16.msra.mxu0 0
      %975 = vmatpush.bf16.msra.mxu0 0
      %976 = vmatpush.bf16.msra.mxu0 0
      %977 = vmatpush.bf16.msra.mxu0 0
      %978 = vmatpush.bf16.msra.mxu0 %v966
      %979 = vmatpush.bf16.msra.mxu0 %v965
      %980 = vmatmul.bf16.gmra.mxu0 %v970
      %v981 = vpop.f32.mrf.mxu0
      %v982 = vadd.f32 %v955, %v981
      %v983 = vpop.f32.mrf.mxu0
      %984 = vdwg.mxu0
      %v985 = vld [vmem:[%s588] sm:$0x1]
      %v986 = vld [vmem:[%s591] sm:$0x1]
      %v987 = vadd.f32 %v659, %v982
      %v988 = vsel %vm681, %v987, 0.0
      %989 = vadd.xlane.f32.xlu0 %v988
      %v990 = vpop.xlane.xlu0 %989
      %v991 = vrcp.pop 32.0
      %v992 = vmul.f32 32.0, %v991
      %v993 = vsub.f32 1.0, %v992
      %v994 = vmul.f32 %v991, %v993
      %v995 = vadd.f32 %v991, %v994
      %vm996 = vweird.f32 %v991
      %v997 = vsel %vm996, %v991, %v995
      %v998 = vmul.f32 %v990, %v997
      %v999 = vsub.f32 %v987, %v998
      %v1000 = vmul.f32 %v999, %v999
      %v1001 = vsel %vm681, %v1000, 0.0
      %1002 = vadd.xlane.f32.xlu0 %v1001
      %v1003 = vpop.xlane.xlu0 %1002
      %v1004 = vmul.f32 %v1003, %v997
      %v1005 = vadd.f32 %v1004, 1e-05
      %v1006 = vrsqrt.pop %v1005
      %v1007 = vmul.f32 %v1006, %v1005
      %v1008 = vmul.f32 %v1007, %v1006
      %v1009 = vmul.f32 0.5, %v1008
      %v1010 = vsub.f32 1.5, %v1009
      %v1011 = vmul.f32 %v1006, %v1010
      %vm1012 = vweird.f32 %v1005
      %vm1013 = vweird.f32 %v1006
      %vm1014 = vmor %vm1012, %vm1013
      %v1015 = vsel %vm1014, %v1006, %v1011
      %v1016 = vmul.f32 %v999, %v1015
      %v1018 = vperm.slane %v985, 0
      %v1020 = vmul.f32 %v1016, %v1018
      %v1022 = vperm.slane %v986, 0
      %v1024 = vadd.f32 %v1020, %v1022
      %v1025 = vpack.c.bf16 %v1024, %v1024
      %v1026 = vld [vmem:[%s596] sm:$0xf]
      %v1027 = vld [vmem:[%s596 + $0x4] sm:$0xf]
      %v1028 = vld [vmem:[%s596 + $0x8] sm:$0xf]
      %v1029 = vld [vmem:[%s596 + $0xc] sm:$0xf]
      %v1030 = vld [vmem:[%s599] sm:$0x1]
      %v1032 = vperm.slane %v1030, 0
      %v1038 = vunpack.c.l.b16 %v1026
      %v1039 = vunpack.c.l.b16 %v1027
      %v1040 = vunpack.c.l.b16 %v1028
      %v1041 = vunpack.c.l.b16 %v1029
      %v1042 = vpack.c.b16 %v1039, %v1038
      %v1043 = vpack.c.b16 %v1041, %v1040
      %v1047 = vsel %vm681, %v1025, 0
      %1049 = vmatpush.bf16.msra.mxu0 0
      %1050 = vmatpush.bf16.msra.mxu0 0
      %1051 = vmatpush.bf16.msra.mxu0 0
      %1052 = vmatpush.bf16.msra.mxu0 0
      %1053 = vmatpush.bf16.msra.mxu0 0
      %1054 = vmatpush.bf16.msra.mxu0 0
      %1055 = vmatpush.bf16.msra.mxu0 %v1043
      %1056 = vmatpush.bf16.msra.mxu0 %v1042
      %1057 = vmatmul.bf16.gmra.mxu0 %v1047
      %v1058 = vpop.f32.mrf.mxu0
      %v1059 = vadd.f32 %v1032, %v1058
      %v1060 = vpop.f32.mrf.mxu0
      %1061 = vdwg.mxu0
      %v1062 = vmax.f32 %v1059, 0.0
      %v1063 = vpack.c.bf16 %v1062, %v1062
      %v1064 = vld [vmem:[%s604] sm:$0xf]
      %v1065 = vld [vmem:[%s604 + $0x4] sm:$0xf]
      %v1066 = vld [vmem:[%s604 + $0x8] sm:$0xf]
      %v1067 = vld [vmem:[%s604 + $0xc] sm:$0xf]
      %v1068 = vld [vmem:[%s607] sm:$0x1]
      %v1070 = vperm.slane %v1068, 0
      %v1076 = vunpack.c.l.b16 %v1064
      %v1077 = vunpack.c.l.b16 %v1065
      %v1078 = vunpack.c.l.b16 %v1066
      %v1079 = vunpack.c.l.b16 %v1067
      %v1080 = vpack.c.b16 %v1077, %v1076
      %v1081 = vpack.c.b16 %v1079, %v1078
      %v1085 = vsel %vm681, %v1063, 0
      %1087 = vmatpush.bf16.msra.mxu0 0
      %1088 = vmatpush.bf16.msra.mxu0 0
      %1089 = vmatpush.bf16.msra.mxu0 0
      %1090 = vmatpush.bf16.msra.mxu0 0
      %1091 = vmatpush.bf16.msra.mxu0 0
      %1092 = vmatpush.bf16.msra.mxu0 0
      %1093 = vmatpush.bf16.msra.mxu0 %v1081
      %1094 = vmatpush.bf16.msra.mxu0 %v1080
      %1095 = vmatmul.bf16.gmra.mxu0 %v1085
      %v1096 = vpop.f32.mrf.mxu0
      %v1097 = vadd.f32 %v1070, %v1096
      %v1098 = vpop.f32.mrf.mxu0
      %1099 = vdwg.mxu0
      %v1100 = vadd.f32 %v1024, %v1097
      %v1101 = vsel %vm681, %v1100, 0.0
      %1102 = vadd.xlane.f32.xlu0 %v1101
      %v1103 = vpop.xlane.xlu0 %1102
      %v1104 = vmul.f32 %v1103, %v997
      %v1105 = vsub.f32 %v1100, %v1104
      %v1106 = vmul.f32 %v1105, %v1105
      %v1107 = vsel %vm681, %v1106, 0.0
      %1108 = vadd.xlane.f32.xlu0 %v1107
      %v1109 = vpop.xlane.xlu0 %1108
      %v1110 = vmul.f32 %v1109, %v997
      %v1111 = vadd.f32 %v1110, 1e-05
      %v1112 = vrsqrt.pop %v1111
      %v1113 = vmul.f32 %v1112, %v1111
      %v1114 = vmul.f32 %v1113, %v1112
      %v1115 = vmul.f32 0.5, %v1114
      %v1116 = vsub.f32 1.5, %v1115
      %v1117 = vmul.f32 %v1112, %v1116
      %vm1118 = vweird.f32 %v1111
      %vm1119 = vweird.f32 %v1112
      %vm1120 = vmor %vm1118, %vm1119
      %v1121 = vsel %vm1120, %v1112, %v1117
      %v1122 = vmul.f32 %v1105, %v1121
      %v1123 = vmul.f32 %v1122, %v1018
      %v1124 = vadd.f32 %v1123, %v1022
      %1125 = vst.msk [vmem:[#allocation2] sm:$0xff] %vm681, %v1124
      %p1126 = scmp.eq.s32.totalorder %s29, 1
      // Predicated region
      $region77: #{mygpt_forward.2} parent=71 // pred_check
        %p1127 = pneg %p1126
      $region78: #{mygpt_forward.2} parent=71 // pred_check_branch
        %1129 = sbr.rel (%p1127) target = $region80
      $region79: #{mygpt_forward.2} parent=71 // pred_region
        %1130 = vst.msk [vmem:[%s611] sm:$0xff] %vm681, %v1124
      $region80: #{mygpt_forward.2} parent=71 // pred_fallthru
        _
      %p1131 = scmp.lt.s32.totalorder %s28, 1
      %s1132 = scalar_select %p1131, %s28, 1
      %s1133 = smul.addr %s1132, 8
      %s1134 = scalar_lea.vmem %s13, %s1133
      // Predicated region
      $region81: #{mygpt_forward.2} parent=71 // pred_check
        %p1135 = pneg %p382
      $region82: #{mygpt_forward.2} parent=71 // pred_check_branch
        %1137 = sbr.rel (%p1135) target = $region84
      $region83: #{mygpt_forward.2} parent=71 // pred_region
        _
      $region84: #{mygpt_forward.2} parent=71 // pred_fallthru
        _
    $region72: #{mygpt_forward.2} parent=5 // pred_fallthru
      _
    %p1138 = scmp.le.s32.totalorder 2, %s19
    // Predicated region
    $region85: #{mygpt_forward.2} parent=5 // pred_check
      %p1139 = pneg %p1138
    $region86: #{mygpt_forward.2} parent=5 // pred_check_branch
      %1141 = sbr.rel (%p1139) target = $region88
    $region87: #{mygpt_forward.2} parent=5 // pred_region
      %s1142 = ssub.s32 %s19, 2
      // Predicated region
      $region89: #{mygpt_forward.2} parent=87 // pred_check
        %p1143 = pneg %p388
      $region90: #{mygpt_forward.2} parent=87 // pred_check_branch
        %1145 = sbr.rel (%p1143) target = $region92
      $region91: #{mygpt_forward.2} parent=87 // pred_region
        %p1146 = scmp.lt.s32.totalorder %s30, 1
        %s1147 = scalar_select %p1146, %s30, 1
        %s1148 = smul.addr %s1147, 8
        %s1149 = scalar_lea.vmem %s13, %s1148
      $region92: #{mygpt_forward.2} parent=87 // pred_fallthru
        _
    $region88: #{mygpt_forward.2} parent=5 // pred_fallthru
      _
  $region6: #{mygpt_forward.2} parent=0 // loop_footer
    %s23 = sadd.s32 1, %s19
  $region7: #{mygpt_forward.2} parent=0 // loop_footer_branch
    %18 = sbr.rel target = $region3
  $region8: #{mygpt_forward.2} parent=0 // loop_exit
    _

</llo_original>
